<compile_context>
chip_gen: v7x
topology: tpu7x:2x2x1
jax: 0.10.0
libtpu: 0.0.40
codegen_flags: <defaults>
</compile_context>

<pallas_src>
import math

import jax
import jax.numpy as jnp
from jax import lax
from jax.experimental import pallas as pl
from jax.experimental.pallas import tpu as pltpu

KH = KW = 5
PAD = 2
BN_EPS = 1e-5
LANE = 128


def _round_up(v, m):
    return (v + m - 1) // m * m


def _pick_batch_tile(n, h, w, target_m=1024):
    """Largest divisor of n whose flattened matmul M = nb*h*w stays near target_m."""
    nb = 1
    for cand in range(1, n + 1):
        if n % cand == 0 and cand * h * w <= target_m:
            nb = cand
    return nb


def conv_block5x5_avg(x_nchw, w_oihw, bn_gamma, bn_beta, bn_mean, bn_var,
                      pool_size=(2, 2), compute_dtype=jnp.float32):
    """Forward pass of ConvBlock5x5 with pool_type='avg' (the module default), eval-mode BN.

    compute_dtype=jnp.bfloat16 halves operand DMA bytes on v6e/v7x (accumulation and all
    elementwise math stay f32); validate the bf16 path with a looser tolerance.
    """
    # TODO(synk): pool_type 'max' / 'avg+max' and training-mode (batch-statistics) BN not implemented.
    N, Cin, H, W = x_nchw.shape
    Cout = w_oihw.shape[0]
    ph, pw = pool_size
    assert H % ph == 0 and W % pw == 0, "non-divisible pooling not implemented"
    H2, W2 = H // ph, W // pw
    Hp = H + 2 * PAD
    KWC = KW * Cin                                  # width taps packed onto the lane axis
    Kdim = KH * KWC                                 # im2col contraction depth
    Kp = _round_up(Kdim, LANE)                      # lane-dense contraction depth
    Cp = _round_up(Cout, LANE)                      # lane-dense padded output channels
    TC = min(Cp, 256)                               # Cout tile: 256 fills the v6e/v7x MXU width
    NB = _pick_batch_tile(N, H, W)                  # images folded into the matmul M dim

    # ---- wrapper-side layout / parameter prep (plain JAX, one-time) ----
    x_nhwc = jnp.transpose(x_nchw, (0, 2, 3, 1)).astype(jnp.float32)
    x_pad = jnp.pad(x_nhwc, ((0, 0), (PAD, PAD), (PAD, PAD), (0, 0)))
    # Pack the KW width taps into the lane axis once in XLA -> (N, Hp, W, KW*Cin). The kernel
    # then only needs KH free leading-axis height slices + one KH-way concat of wide pieces.
    x_packed = jnp.concatenate([x_pad[:, :, kw:kw + W, :] for kw in range(KW)], axis=-1)
    x_packed = x_packed.astype(compute_dtype)

    # Fold eval-mode BatchNorm: scale folds into the conv weights, shift stays as a bias.
    inv_std = 1.0 / jnp.sqrt(bn_var.astype(jnp.float32) + BN_EPS)
    scale = bn_gamma.astype(jnp.float32) * inv_std                       # (Cout,)
    shift = bn_beta.astype(jnp.float32) - bn_mean.astype(jnp.float32) * scale

    w_hwio = jnp.transpose(w_oihw, (2, 3, 1, 0)).astype(jnp.float32)     # (KH,KW,Cin,Cout)
    w_mat = (w_hwio * scale[None, None, None, :]).reshape(Kdim, Cout)    # BN scale folded
    w_mat = jnp.pad(w_mat, ((0, Kp - Kdim), (0, Cp - Cout))).astype(compute_dtype)  # (Kp, Cp)
    shift_p = jnp.pad(shift, (0, Cp - Cout)).reshape(1, Cp)              # (1, Cp), f32

    def kernel(xw_ref, w_ref, shift_ref, o_ref, r_ref):
        xw = xw_ref[...]                                     # (NB, Hp, W, KWC)
        # im2col: KH free leading-axis height slices of the width-packed input + one fused
        # lane concat (plus a zero block so K is lane-dense) -> whole conv is ONE MXU matmul.
        pieces = [xw[:, kh:kh + H] for kh in range(KH)]      # each (NB, H, W, KWC)
        if Kp > Kdim:
            pieces.append(jnp.zeros((NB, H, W, Kp - Kdim), xw.dtype))
        col = jnp.concatenate(pieces, axis=-1)               # (NB, H, W, Kp), (kh,kw,cin) order
        col = col.reshape(NB * H * W, Kp)
        acc = jnp.dot(col, w_ref[...], preferred_element_type=jnp.float32)  # (NB*H*W, TC) f32
        # Folded-BN shift + ReLU (scale already folded into the weights).
        y = jnp.maximum(acc + shift_ref[...], 0.0).reshape(NB, H2, ph, W, TC)
        # 2x2 avg-pool: row pairs summed on the value (free leading-axis selection, no scratch
        # round trip); only the sublane-strided column step goes through a small scratch.
        rsum = y[:, :, 0]
        for di in range(1, ph):
            rsum = rsum + y[:, :, di]
        r_ref[...] = rsum                                     # (NB, H2, W, TC)
        csum = r_ref[:, :, pl.ds(0, W2, stride=pw), :]
        for dj in range(1, pw):
            csum = csum + r_ref[:, :, pl.ds(dj, W2, stride=pw), :]
        o_ref[...] = (csum * (1.0 / float(ph * pw))).astype(o_ref.dtype)

    # Scoped-VMEM request from the lane-padded per-step footprint, capped per generation.
    isz = jnp.dtype(compute_dtype).itemsize
    in_blk = NB * Hp * _round_up(W, 8) * _round_up(KWC, LANE) * isz
    w_blk = Kp * _round_up(TC, LANE) * isz
    sh_blk = 8 * _round_up(TC, LANE) * 4
    out_blk = NB * H2 * _round_up(W2, 8) * _round_up(TC, LANE) * 4
    scratch_blk = NB * H2 * _round_up(W, 8) * _round_up(TC, LANE) * 4
    interm = 2 * NB * H * W * (Kp * isz + _round_up(TC, LANE) * 4)
    footprint = 2 * (in_blk + w_blk + sh_blk + out_blk) + scratch_blk + interm
    try:
        vmem_cap = int(pltpu.get_tpu_info().vmem_capacity_bytes)   # 128 MiB v5e/v6e, 64 MiB v7x
    except Exception:
        vmem_cap = 64 * 1024 * 1024
    vmem_limit = int(min(int(0.78 * vmem_cap), max(32 * 1024 * 1024, 2 * footprint)))

    cost = pl.CostEstimate(
        flops=2 * N * H * W * Kdim * Cout,
        transcendentals=0,
        bytes_accessed=int(x_packed.size * isz + w_mat.size * isz
                           + shift_p.size * 4 + N * H2 * W2 * Cp * 4),
    )

    grid = (Cp // TC, N // NB)  # Cout tiles outer -> weight-stationary over the inner batch axis

    out = pl.pallas_call(
        kernel,
        out_shape=jax.ShapeDtypeStruct((N, H2, W2, Cp), jnp.float32),
        grid=grid,
        # TODO(synk): for large H*W (esp. v7x's 64 MiB VMEM) add a spatial row-tile grid axis
        # with a 4-row halo (pl.Element on H) and a K-tile axis for very deep Cin; at these
        # shapes whole-image-per-step with batch folded into M is the right blocking.
        in_specs=[
            pl.BlockSpec((NB, Hp, W, KWC), lambda c, n: (n, 0, 0, 0)),
            pl.BlockSpec((Kp, TC), lambda c, n: (0, c)),
            pl.BlockSpec((1, TC), lambda c, n: (0, c)),
        ],
        out_specs=pl.BlockSpec((NB, H2, W2, TC), lambda c, n: (n, 0, 0, c)),
        scratch_shapes=[pltpu.VMEM((NB, H2, W, TC), jnp.float32)],
        compiler_params=pltpu.CompilerParams(
            dimension_semantics=("parallel", "parallel"),
            vmem_limit_bytes=vmem_limit,
        ),
        cost_estimate=cost,
    )(x_packed, w_mat, shift_p)

    out = out[..., :Cout]                           # drop lane padding
    return jnp.transpose(out, (0, 3, 1, 2))         # back to NCHW


if __name__ == "__main__":
    key = jax.random.PRNGKey(0)
    N, Cin, H, W = 2, 4, 16, 16
    Cout = 8

    k_x, k_w = jax.random.split(key)
    x = jax.random.normal(k_x, (N, Cin, H, W), jnp.float32)

    # Conv weight: xavier_uniform_ (matching init_layer), no bias.
    fan_in, fan_out = Cin * KH * KW, Cout * KH * KW
    bound = math.sqrt(6.0 / (fan_in + fan_out))
    w = jax.random.uniform(k_w, (Cout, Cin, KH, KW), jnp.float32, -bound, bound)
    # BatchNorm (eval mode). init_bn gives gamma=1/beta=0/mean=0/var=1; use non-trivial
    # values here so the BN scale/shift folding is actually exercised by the check.
    gamma = jnp.linspace(0.5, 1.5, Cout).astype(jnp.float32)
    beta = jnp.linspace(-0.2, 0.2, Cout).astype(jnp.float32)
    mean = jnp.linspace(-0.1, 0.1, Cout).astype(jnp.float32)
    var = jnp.linspace(0.5, 2.0, Cout).astype(jnp.float32)

    out = jax.block_until_ready(conv_block5x5_avg(x, w, gamma, beta, mean, var))

    # Pure-JAX reference for verification.
    conv = lax.conv_general_dilated(x, w, (1, 1), ((PAD, PAD), (PAD, PAD)),
                                    dimension_numbers=("NCHW", "OIHW", "NCHW"))
    bn = ((conv - mean.reshape(1, -1, 1, 1)) / jnp.sqrt(var.reshape(1, -1, 1, 1) + BN_EPS)
          * gamma.reshape(1, -1, 1, 1) + beta.reshape(1, -1, 1, 1))
    act = jnp.maximum(bn, 0.0)
    ref = act.reshape(N, Cout, H // 2, 2, W // 2, 2).mean(axis=(3, 5))

    assert out.shape == ref.shape == (N, Cout, H // 2, W // 2)
    max_err = float(jnp.max(jnp.abs(out - ref)))
    assert jnp.allclose(out, ref, atol=1e-4, rtol=1e-4), f"max abs err {max_err}"

    print("KERNEL_OK")
</pallas_src>

<mosaic_0001>
module attributes {stable_mosaic.version = 11 : i64} {
  func.func @kernel(%arg0: i32, %arg1: i32, %arg2: memref<2x20x16x20xf32, #tpu.memory_space<vmem>>, %arg3: memref<128x128xf32, #tpu.memory_space<vmem>>, %arg4: memref<1x128xf32, #tpu.memory_space<vmem>>, %arg5: memref<2x8x8x128xf32, #tpu.memory_space<vmem>>, %arg6: memref<2x8x16x128xf32, #tpu.memory_space<vmem>>) attributes {dimension_semantics = [#tpu.dimension_semantics<parallel>, #tpu.dimension_semantics<parallel>], iteration_bounds = array<i64: 1, 1>, scalar_prefetch = 0 : i64, scratch_operands = 1 : i64, tpu.core_type = #tpu.core_type<tc>, window_params = [{transform_indices = @transform_0, window_bounds = array<i64: 2, 20, 16, 20>}, {transform_indices = @transform_1, window_bounds = array<i64: 128, 128>}, {transform_indices = @transform_2, window_bounds = array<i64: 1, 128>}, {transform_indices = @transform_3, window_bounds = array<i64: 2, 8, 8, 128>}]} {
    %c0 = arith.constant 0 : index
    %c0_0 = arith.constant 0 : index
    %c0_1 = arith.constant 0 : index
    %c0_2 = arith.constant 0 : index
    %0 = vector.load %arg2[%c0, %c0_0, %c0_1, %c0_2] : memref<2x20x16x20xf32, #tpu.memory_space<vmem>>, vector<2x20x16x20xf32>
    %1 = vector.extract_strided_slice %0 {offsets = [0, 0, 0, 0], sizes = [2, 16, 16, 20], strides = [1, 1, 1, 1]} : vector<2x20x16x20xf32> to vector<2x16x16x20xf32>
    %2 = vector.extract_strided_slice %0 {offsets = [0, 1, 0, 0], sizes = [2, 16, 16, 20], strides = [1, 1, 1, 1]} : vector<2x20x16x20xf32> to vector<2x16x16x20xf32>
    %3 = vector.extract_strided_slice %0 {offsets = [0, 2, 0, 0], sizes = [2, 16, 16, 20], strides = [1, 1, 1, 1]} : vector<2x20x16x20xf32> to vector<2x16x16x20xf32>
    %4 = vector.extract_strided_slice %0 {offsets = [0, 3, 0, 0], sizes = [2, 16, 16, 20], strides = [1, 1, 1, 1]} : vector<2x20x16x20xf32> to vector<2x16x16x20xf32>
    %5 = vector.extract_strided_slice %0 {offsets = [0, 4, 0, 0], sizes = [2, 16, 16, 20], strides = [1, 1, 1, 1]} : vector<2x20x16x20xf32> to vector<2x16x16x20xf32>
    %cst = arith.constant 0.000000e+00 : f32
    %6 = vector.broadcast %cst : f32 to vector<2x16x16x28xf32>
    %7 = tpu.concatenate %1, %2, %3, %4, %5, %6 in 3 : vector<2x16x16x20xf32>, vector<2x16x16x20xf32>, vector<2x16x16x20xf32>, vector<2x16x16x20xf32>, vector<2x16x16x20xf32>, vector<2x16x16x28xf32> -> vector<2x16x16x128xf32>
    %8 = vector.shape_cast %7 : vector<2x16x16x128xf32> to vector<512x128xf32>
    %c0_3 = arith.constant 0 : index
    %c0_4 = arith.constant 0 : index
    %9 = vector.load %arg3[%c0_3, %c0_4] : memref<128x128xf32, #tpu.memory_space<vmem>>, vector<128x128xf32>
    %cst_5 = arith.constant dense<0.000000e+00> : vector<512x128xf32>
    %10 = tpu.matmul %8, %9, %cst_5 {dimension_numbers = #tpu.dot_dimension_numbers<[1], [0], [0], [1], [0, 0, 1, 1], [], []>} : vector<512x128xf32>, vector<128x128xf32>, vector<512x128xf32> -> vector<512x128xf32>
    %c0_6 = arith.constant 0 : index
    %c0_7 = arith.constant 0 : index
    %11 = vector.load %arg4[%c0_6, %c0_7] : memref<1x128xf32, #tpu.memory_space<vmem>>, vector<1x128xf32>
    %12 = vector.broadcast %11 : vector<1x128xf32> to vector<512x128xf32>
    %13 = arith.addf %10, %12 : vector<512x128xf32>
    %cst_8 = arith.constant 0.000000e+00 : f32
    %14 = vector.broadcast %cst_8 : f32 to vector<512x128xf32>
    %15 = arith.maximumf %13, %14 : vector<512x128xf32>
    %16 = vector.shape_cast %15 : vector<512x128xf32> to vector<2x8x2x16x128xf32>
    %17 = vector.extract_strided_slice %16 {offsets = [0, 0, 0, 0, 0], sizes = [2, 8, 1, 16, 128], strides = [1, 1, 1, 1, 1]} : vector<2x8x2x16x128xf32> to vector<2x8x1x16x128xf32>
    %18 = vector.shape_cast %17 : vector<2x8x1x16x128xf32> to vector<2x8x16x128xf32>
    %19 = vector.extract_strided_slice %16 {offsets = [0, 0, 1, 0, 0], sizes = [2, 8, 1, 16, 128], strides = [1, 1, 1, 1, 1]} : vector<2x8x2x16x128xf32> to vector<2x8x1x16x128xf32>
    %20 = vector.shape_cast %19 : vector<2x8x1x16x128xf32> to vector<2x8x16x128xf32>
    %21 = arith.addf %18, %20 : vector<2x8x16x128xf32>
    %c0_9 = arith.constant 0 : index
    %c0_10 = arith.constant 0 : index
    %c0_11 = arith.constant 0 : index
    %c0_12 = arith.constant 0 : index
    %22 = vector.load %arg6[%c0_9, %c0_10, %c0_11, %c0_12] : memref<2x8x16x128xf32, #tpu.memory_space<vmem>>, vector<2x8x16x128xf32>
    tpu.vector_store %arg6[%c0_9, %c0_10, %c0_11, %c0_12], %21 {strides = array<i32>} : memref<2x8x16x128xf32, #tpu.memory_space<vmem>>, vector<2x8x16x128xf32>,
    %c0_13 = arith.constant 0 : index
    %c0_14 = arith.constant 0 : index
    %c0_15 = arith.constant 0 : index
    %c0_16 = arith.constant 0 : index
    %23 = tpu.strided_load %arg6[%c0_13, %c0_14, %c0_15, %c0_16] {strides = array<i32: 1, 1, 2, 1>} : memref<2x8x16x128xf32, #tpu.memory_space<vmem>>, vector<2x8x8x128xf32>
    %c0_17 = arith.constant 0 : index
    %c0_18 = arith.constant 0 : index
    %c1 = arith.constant 1 : index
    %c0_19 = arith.constant 0 : index
    %24 = tpu.strided_load %arg6[%c0_17, %c0_18, %c1, %c0_19] {strides = array<i32: 1, 1, 2, 1>} : memref<2x8x16x128xf32, #tpu.memory_space<vmem>>, vector<2x8x8x128xf32>
    %25 = arith.addf %23, %24 : vector<2x8x8x128xf32>
    %cst_20 = arith.constant 2.500000e-01 : f32
    %26 = vector.broadcast %cst_20 : f32 to vector<2x8x8x128xf32>
    %27 = arith.mulf %25, %26 : vector<2x8x8x128xf32>
    %c0_21 = arith.constant 0 : index
    %c0_22 = arith.constant 0 : index
    %c0_23 = arith.constant 0 : index
    %c0_24 = arith.constant 0 : index
    %28 = vector.load %arg5[%c0_21, %c0_22, %c0_23, %c0_24] : memref<2x8x8x128xf32, #tpu.memory_space<vmem>>, vector<2x8x8x128xf32>
    tpu.vector_store %arg5[%c0_21, %c0_22, %c0_23, %c0_24], %27 {strides = array<i32>} : memref<2x8x8x128xf32, #tpu.memory_space<vmem>>, vector<2x8x8x128xf32>,
    return
  }
  func.func @transform_0(%arg0: i32, %arg1: i32) -> (i32, i32, i32, i32) {
    %c0_i32 = arith.constant 0 : i32
    %c0_i32_0 = arith.constant 0 : i32
    %c0_i32_1 = arith.constant 0 : i32
    %c0_i32_2 = arith.constant 0 : i32
    return %arg1, %c0_i32, %c0_i32_0, %c0_i32_1 : i32, i32, i32, i32
  }
  func.func @transform_1(%arg0: i32, %arg1: i32) -> (i32, i32) {
    %c0_i32 = arith.constant 0 : i32
    %c0_i32_0 = arith.constant 0 : i32
    return %c0_i32, %arg0 : i32, i32
  }
  func.func @transform_2(%arg0: i32, %arg1: i32) -> (i32, i32) {
    %c0_i32 = arith.constant 0 : i32
    %c0_i32_0 = arith.constant 0 : i32
    return %c0_i32, %arg0 : i32, i32
  }
  func.func @transform_3(%arg0: i32, %arg1: i32) -> (i32, i32, i32, i32) {
    %c0_i32 = arith.constant 0 : i32
    %c0_i32_0 = arith.constant 0 : i32
    %c0_i32_1 = arith.constant 0 : i32
    return %arg1, %c0_i32, %c0_i32_0, %arg0 : i32, i32, i32, i32
  }
}

</mosaic_0001>

<llo_original>
// kernel: tpu_custom_call.1
$region0: #{tpu_custom_call.1}
  #allocation0 [shape = 'u32[]', space=smem, size = 0x4, offset = 0x4, fixed_abs, tag = 'smem constant byte address 0x4 - core index']
  #allocation1 [shape = 'u32[144,128]{1,0:T(1,128)}', space=vmem, size = 0x12000, scoped, tag = 'internal scratch']
  #allocation2 [shape = 'f32[2,8,16,128]{3,2,1,0:T(8,128)}', space=vmem, size = 0x20000, scoped, tag = 'scratch operand']
  %s0 = inlined_call_operand.hbm [shape: f32[2,20,16,20], index: 0, kind: input, shape index: {}]
  %s1 = inlined_call_operand.hbm [shape: f32[128,128], index: 1, kind: input, shape index: {}]
  %s2 = inlined_call_operand.vmem [shape: f32[1,128], index: 2, kind: input, shape index: {}]
  %s3 = inlined_call_operand.hbm [shape: f32[2,8,8,128], index: 3, kind: output, shape index: {}]
  %s4 = sld [smem:[#allocation0]]
  $region30: #{tpu_custom_call.1} parent=0
    _
  %s6 = ssub.s32 1, %s4
  %s7 = scalar_select 0, %s6, %s4
  $region1: #{tpu_custom_call.1} parent=0
    #allocation3 [shape = 'u8[327680]{0}', space=vmem, size = 0x50000, scoped, tag = 'input window, operand 0, single buffered']
    #allocation4 [shape = 's32[1]{0}', space=sflag, size = 0x4, scoped, tag = 'scoped memory for tpu_custom_call.1']
    #allocation5 [shape = 's32[1]{0}', space=sflag, size = 0x4, scoped, tag = 'scoped memory for tpu_custom_call.1']
    #allocation6 [shape = 'u8[65536]{0}', space=vmem, size = 0x10000, scoped, tag = 'input window, operand 1, single buffered']
    #allocation7 [shape = 's32[1]{0}', space=sflag, size = 0x4, scoped, tag = 'scoped memory for tpu_custom_call.1']
    #allocation8 [shape = 'u8[65536]{0}', space=vmem, size = 0x10000, scoped, tag = 'output window, operand 0, single buffered']
    %8 = vsyncpa [#allocation4], 0
    %9 = vsyncpa [#allocation7], 0
    %10 = vsyncpa [#allocation5], 0
    // Predicated region
    $region2: #{tpu_custom_call.1} parent=1 // pred_check
      _
    $region3: #{tpu_custom_call.1} parent=1 // pred_check_branch
      %12 = sbr.rel (0) target = $region5
    $region4: #{tpu_custom_call.1} parent=1 // pred_region
      %s14 = ssub.s32 10240, 10240
      %15 = vsyncadd [#allocation4], %s14
      %s16 = sshll.u32 [#allocation3], 4
      %s17 = int_to_ptr.vmem [resolvable:$true] %s16
      %22 = dma.hbm_to_vmem [thread:$0]  %s0, 10240, %s17, [#allocation4], 128, 128, 8
    $region5: #{tpu_custom_call.1} parent=1 // pred_fallthru
      _
    // Predicated region
    $region6: #{tpu_custom_call.1} parent=1 // pred_check
      _
    $region7: #{tpu_custom_call.1} parent=1 // pred_check_branch
      %24 = sbr.rel (0) target = $region9
    $region8: #{tpu_custom_call.1} parent=1 // pred_region
      %s26 = ssub.s32 2048, 2048
      %27 = vsyncadd [#allocation7], %s26
      %s28 = sshll.u32 [#allocation6], 4
      %s29 = int_to_ptr.vmem [resolvable:$true] %s28
      %34 = dma.hbm_to_vmem [thread:$0]  %s1, 2048, %s29, [#allocation7], 128, 128, 8
    $region9: #{tpu_custom_call.1} parent=1 // pred_fallthru
      _
    // Predicated region
    $region10: #{tpu_custom_call.1} parent=1 // pred_check
      _
    $region11: #{tpu_custom_call.1} parent=1 // pred_check_branch
      %36 = sbr.rel (0) target = $region13
    $region12: #{tpu_custom_call.1} parent=1 // pred_region
      _
    $region13: #{tpu_custom_call.1} parent=1 // pred_fallthru
      _
    // Predicated region
    $region14: #{tpu_custom_call.1} parent=1 // pred_check
      _
    $region15: #{tpu_custom_call.1} parent=1 // pred_check_branch
      %38 = sbr.rel (0) target = $region17
    $region16: #{tpu_custom_call.1} parent=1 // pred_region
      %39 = dma.done [#allocation4], 10240
    $region17: #{tpu_custom_call.1} parent=1 // pred_fallthru
      _
    // Predicated region
    $region18: #{tpu_custom_call.1} parent=1 // pred_check
      _
    $region19: #{tpu_custom_call.1} parent=1 // pred_check_branch
      %41 = sbr.rel (0) target = $region21
    $region20: #{tpu_custom_call.1} parent=1 // pred_region
      %42 = dma.done [#allocation7], 2048
    $region21: #{tpu_custom_call.1} parent=1 // pred_fallthru
      _
    %v43 = vld [vmem:[#allocation3] sm:$0xff]
    %v44 = vld [vmem:[#allocation3 + $0x8] sm:$0xff]
    %v45 = vld [vmem:[#allocation3 + $0x10] sm:$0xff]
    %v46 = vld [vmem:[#allocation3 + $0x18] sm:$0xff]
    %v47 = vld [vmem:[#allocation3 + $0x20] sm:$0xff]
    %v48 = vld [vmem:[#allocation3 + $0x28] sm:$0xff]
    %v49 = vld [vmem:[#allocation3 + $0x30] sm:$0xff]
    %v50 = vld [vmem:[#allocation3 + $0x38] sm:$0xff]
    %v51 = vld [vmem:[#allocation3 + $0x40] sm:$0xff]
    %v52 = vld [vmem:[#allocation3 + $0x48] sm:$0xff]
    %v53 = vld [vmem:[#allocation3 + $0x50] sm:$0xff]
    %v54 = vld [vmem:[#allocation3 + $0x58] sm:$0xff]
    %v55 = vld [vmem:[#allocation3 + $0x60] sm:$0xff]
    %v56 = vld [vmem:[#allocation3 + $0x68] sm:$0xff]
    %v57 = vld [vmem:[#allocation3 + $0x70] sm:$0xff]
    %v58 = vld [vmem:[#allocation3 + $0x78] sm:$0xff]
    %v59 = vld [vmem:[#allocation3 + $0x80] sm:$0xff]
    %v60 = vld [vmem:[#allocation3 + $0x88] sm:$0xff]
    %v61 = vld [vmem:[#allocation3 + $0x90] sm:$0xff]
    %v62 = vld [vmem:[#allocation3 + $0x98] sm:$0xff]
    %v63 = vld [vmem:[#allocation3 + $0xa0] sm:$0xff]
    %v64 = vld [vmem:[#allocation3 + $0xa8] sm:$0xff]
    %v65 = vld [vmem:[#allocation3 + $0xb0] sm:$0xff]
    %v66 = vld [vmem:[#allocation3 + $0xb8] sm:$0xff]
    %v67 = vld [vmem:[#allocation3 + $0xc0] sm:$0xff]
    %v68 = vld [vmem:[#allocation3 + $0xc8] sm:$0xff]
    %v69 = vld [vmem:[#allocation3 + $0xd0] sm:$0xff]
    %v70 = vld [vmem:[#allocation3 + $0xd8] sm:$0xff]
    %v71 = vld [vmem:[#allocation3 + $0xe0] sm:$0xff]
    %v72 = vld [vmem:[#allocation3 + $0xe8] sm:$0xff]
    %v73 = vld [vmem:[#allocation3 + $0xf0] sm:$0xff]
    %v74 = vld [vmem:[#allocation3 + $0xf8] sm:$0xff]
    %v75 = vld [vmem:[#allocation3 + $0x100] sm:$0xff]
    %v76 = vld [vmem:[#allocation3 + $0x108] sm:$0xff]
    %v77 = vld [vmem:[#allocation3 + $0x110] sm:$0xff]
    %v78 = vld [vmem:[#allocation3 + $0x118] sm:$0xff]
    %v79 = vld [vmem:[#allocation3 + $0x120] sm:$0xff]
    %v80 = vld [vmem:[#allocation3 + $0x128] sm:$0xff]
    %v81 = vld [vmem:[#allocation3 + $0x130] sm:$0xff]
    %v82 = vld [vmem:[#allocation3 + $0x138] sm:$0xff]
    %v83 = vld [vmem:[#allocation3 + $0x140] sm:$0xff]
    %v84 = vld [vmem:[#allocation3 + $0x148] sm:$0xff]
    %v85 = vld [vmem:[#allocation3 + $0x150] sm:$0xff]
    %v86 = vld [vmem:[#allocation3 + $0x158] sm:$0xff]
    %v87 = vld [vmem:[#allocation3 + $0x160] sm:$0xff]
    %v88 = vld [vmem:[#allocation3 + $0x168] sm:$0xff]
    %v89 = vld [vmem:[#allocation3 + $0x170] sm:$0xff]
    %v90 = vld [vmem:[#allocation3 + $0x178] sm:$0xff]
    %v91 = vld [vmem:[#allocation3 + $0x180] sm:$0xff]
    %v92 = vld [vmem:[#allocation3 + $0x188] sm:$0xff]
    %v93 = vld [vmem:[#allocation3 + $0x190] sm:$0xff]
    %v94 = vld [vmem:[#allocation3 + $0x198] sm:$0xff]
    %v95 = vld [vmem:[#allocation3 + $0x1a0] sm:$0xff]
    %v96 = vld [vmem:[#allocation3 + $0x1a8] sm:$0xff]
    %v97 = vld [vmem:[#allocation3 + $0x1b0] sm:$0xff]
    %v98 = vld [vmem:[#allocation3 + $0x1b8] sm:$0xff]
    %v99 = vld [vmem:[#allocation3 + $0x1c0] sm:$0xff]
    %v100 = vld [vmem:[#allocation3 + $0x1c8] sm:$0xff]
    %v101 = vld [vmem:[#allocation3 + $0x1d0] sm:$0xff]
    %v102 = vld [vmem:[#allocation3 + $0x1d8] sm:$0xff]
    %v103 = vld [vmem:[#allocation3 + $0x1e0] sm:$0xff]
    %v104 = vld [vmem:[#allocation3 + $0x1e8] sm:$0xff]
    %v105 = vld [vmem:[#allocation3 + $0x1f0] sm:$0xff]
    %v106 = vld [vmem:[#allocation3 + $0x1f8] sm:$0xff]
    %v107 = vld [vmem:[#allocation3 + $0x200] sm:$0xff]
    %v108 = vld [vmem:[#allocation3 + $0x208] sm:$0xff]
    %v109 = vld [vmem:[#allocation3 + $0x210] sm:$0xff]
    %v110 = vld [vmem:[#allocation3 + $0x218] sm:$0xff]
    %v111 = vld [vmem:[#allocation3 + $0x220] sm:$0xff]
    %v112 = vld [vmem:[#allocation3 + $0x228] sm:$0xff]
    %v113 = vld [vmem:[#allocation3 + $0x230] sm:$0xff]
    %v114 = vld [vmem:[#allocation3 + $0x238] sm:$0xff]
    %v115 = vld [vmem:[#allocation3 + $0x240] sm:$0xff]
    %v116 = vld [vmem:[#allocation3 + $0x248] sm:$0xff]
    %v117 = vld [vmem:[#allocation3 + $0x250] sm:$0xff]
    %v118 = vld [vmem:[#allocation3 + $0x258] sm:$0xff]
    %v119 = vld [vmem:[#allocation3 + $0x260] sm:$0xff]
    %v120 = vld [vmem:[#allocation3 + $0x268] sm:$0xff]
    %v121 = vld [vmem:[#allocation3 + $0x270] sm:$0xff]
    %v122 = vld [vmem:[#allocation3 + $0x278] sm:$0xff]
    %187 = vrot.lane.b32.xlu0 %v45, 20
    %v188 = vpop.permute.xlu0 %187
    %189 = vrot.lane.b32.xlu0 %v46, 20
    %v190 = vpop.permute.xlu0 %189
    %191 = vrot.lane.b32.xlu0 %v47, 20
    %v192 = vpop.permute.xlu0 %191
    %193 = vrot.lane.b32.xlu0 %v48, 20
    %v194 = vpop.permute.xlu0 %193
    %195 = vrot.lane.b32.xlu0 %v49, 20
    %v196 = vpop.permute.xlu0 %195
    %197 = vrot.lane.b32.xlu0 %v50, 20
    %v198 = vpop.permute.xlu0 %197
    %199 = vrot.lane.b32.xlu0 %v51, 20
    %v200 = vpop.permute.xlu0 %199
    %201 = vrot.lane.b32.xlu0 %v52, 20
    %v202 = vpop.permute.xlu0 %201
    %203 = vrot.lane.b32.xlu0 %v53, 20
    %v204 = vpop.permute.xlu0 %203
    %205 = vrot.lane.b32.xlu0 %v54, 20
    %v206 = vpop.permute.xlu0 %205
    %207 = vrot.lane.b32.xlu0 %v55, 20
    %v208 = vpop.permute.xlu0 %207
    %209 = vrot.lane.b32.xlu0 %v56, 20
    %v210 = vpop.permute.xlu0 %209
    %211 = vrot.lane.b32.xlu0 %v57, 20
    %v212 = vpop.permute.xlu0 %211
    %213 = vrot.lane.b32.xlu0 %v58, 20
    %v214 = vpop.permute.xlu0 %213
    %215 = vrot.lane.b32.xlu0 %v59, 20
    %v216 = vpop.permute.xlu0 %215
    %217 = vrot.lane.b32.xlu0 %v60, 20
    %v218 = vpop.permute.xlu0 %217
    %219 = vrot.lane.b32.xlu0 %v61, 20
    %v220 = vpop.permute.xlu0 %219
    %221 = vrot.lane.b32.xlu0 %v62, 20
    %v222 = vpop.permute.xlu0 %221
    %223 = vrot.lane.b32.xlu0 %v63, 20
    %v224 = vpop.permute.xlu0 %223
    %225 = vrot.lane.b32.xlu0 %v64, 20
    %v226 = vpop.permute.xlu0 %225
    %227 = vrot.lane.b32.xlu0 %v65, 20
    %v228 = vpop.permute.xlu0 %227
    %229 = vrot.lane.b32.xlu0 %v66, 20
    %v230 = vpop.permute.xlu0 %229
    %231 = vrot.lane.b32.xlu0 %v67, 20
    %v232 = vpop.permute.xlu0 %231
    %233 = vrot.lane.b32.xlu0 %v68, 20
    %v234 = vpop.permute.xlu0 %233
    %235 = vrot.lane.b32.xlu0 %v69, 20
    %v236 = vpop.permute.xlu0 %235
    %237 = vrot.lane.b32.xlu0 %v70, 20
    %v238 = vpop.permute.xlu0 %237
    %239 = vrot.lane.b32.xlu0 %v71, 20
    %v240 = vpop.permute.xlu0 %239
    %241 = vrot.lane.b32.xlu0 %v72, 20
    %v242 = vpop.permute.xlu0 %241
    %243 = vrot.lane.b32.xlu0 %v73, 20
    %v244 = vpop.permute.xlu0 %243
    %245 = vrot.lane.b32.xlu0 %v74, 20
    %v246 = vpop.permute.xlu0 %245
    %247 = vrot.lane.b32.xlu0 %v75, 20
    %v248 = vpop.permute.xlu0 %247
    %249 = vrot.lane.b32.xlu0 %v76, 20
    %v250 = vpop.permute.xlu0 %249
    %251 = vrot.lane.b32.xlu0 %v85, 20
    %v252 = vpop.permute.xlu0 %251
    %253 = vrot.lane.b32.xlu0 %v86, 20
    %v254 = vpop.permute.xlu0 %253
    %255 = vrot.lane.b32.xlu0 %v87, 20
    %v256 = vpop.permute.xlu0 %255
    %257 = vrot.lane.b32.xlu0 %v88, 20
    %v258 = vpop.permute.xlu0 %257
    %259 = vrot.lane.b32.xlu0 %v89, 20
    %v260 = vpop.permute.xlu0 %259
    %261 = vrot.lane.b32.xlu0 %v90, 20
    %v262 = vpop.permute.xlu0 %261
    %263 = vrot.lane.b32.xlu0 %v91, 20
    %v264 = vpop.permute.xlu0 %263
    %265 = vrot.lane.b32.xlu0 %v92, 20
    %v266 = vpop.permute.xlu0 %265
    %267 = vrot.lane.b32.xlu0 %v93, 20
    %v268 = vpop.permute.xlu0 %267
    %269 = vrot.lane.b32.xlu0 %v94, 20
    %v270 = vpop.permute.xlu0 %269
    %271 = vrot.lane.b32.xlu0 %v95, 20
    %v272 = vpop.permute.xlu0 %271
    %273 = vrot.lane.b32.xlu0 %v96, 20
    %v274 = vpop.permute.xlu0 %273
    %275 = vrot.lane.b32.xlu0 %v97, 20
    %v276 = vpop.permute.xlu0 %275
    %277 = vrot.lane.b32.xlu0 %v98, 20
    %v278 = vpop.permute.xlu0 %277
    %279 = vrot.lane.b32.xlu0 %v99, 20
    %v280 = vpop.permute.xlu0 %279
    %281 = vrot.lane.b32.xlu0 %v100, 20
    %v282 = vpop.permute.xlu0 %281
    %283 = vrot.lane.b32.xlu0 %v101, 20
    %v284 = vpop.permute.xlu0 %283
    %285 = vrot.lane.b32.xlu0 %v102, 20
    %v286 = vpop.permute.xlu0 %285
    %287 = vrot.lane.b32.xlu0 %v103, 20
    %v288 = vpop.permute.xlu0 %287
    %289 = vrot.lane.b32.xlu0 %v104, 20
    %v290 = vpop.permute.xlu0 %289
    %291 = vrot.lane.b32.xlu0 %v105, 20
    %v292 = vpop.permute.xlu0 %291
    %293 = vrot.lane.b32.xlu0 %v106, 20
    %v294 = vpop.permute.xlu0 %293
    %295 = vrot.lane.b32.xlu0 %v107, 20
    %v296 = vpop.permute.xlu0 %295
    %297 = vrot.lane.b32.xlu0 %v108, 20
    %v298 = vpop.permute.xlu0 %297
    %299 = vrot.lane.b32.xlu0 %v109, 20
    %v300 = vpop.permute.xlu0 %299
    %301 = vrot.lane.b32.xlu0 %v110, 20
    %v302 = vpop.permute.xlu0 %301
    %303 = vrot.lane.b32.xlu0 %v111, 20
    %v304 = vpop.permute.xlu0 %303
    %305 = vrot.lane.b32.xlu0 %v112, 20
    %v306 = vpop.permute.xlu0 %305
    %307 = vrot.lane.b32.xlu0 %v113, 20
    %v308 = vpop.permute.xlu0 %307
    %309 = vrot.lane.b32.xlu0 %v114, 20
    %v310 = vpop.permute.xlu0 %309
    %311 = vrot.lane.b32.xlu0 %v115, 20
    %v312 = vpop.permute.xlu0 %311
    %313 = vrot.lane.b32.xlu0 %v116, 20
    %v314 = vpop.permute.xlu0 %313
    %383 = vrot.lane.b32.xlu0 %v47, 40
    %v384 = vpop.permute.xlu0 %383
    %385 = vrot.lane.b32.xlu0 %v48, 40
    %v386 = vpop.permute.xlu0 %385
    %387 = vrot.lane.b32.xlu0 %v49, 40
    %v388 = vpop.permute.xlu0 %387
    %389 = vrot.lane.b32.xlu0 %v50, 40
    %v390 = vpop.permute.xlu0 %389
    %391 = vrot.lane.b32.xlu0 %v51, 40
    %v392 = vpop.permute.xlu0 %391
    %393 = vrot.lane.b32.xlu0 %v52, 40
    %v394 = vpop.permute.xlu0 %393
    %395 = vrot.lane.b32.xlu0 %v53, 40
    %v396 = vpop.permute.xlu0 %395
    %397 = vrot.lane.b32.xlu0 %v54, 40
    %v398 = vpop.permute.xlu0 %397
    %399 = vrot.lane.b32.xlu0 %v55, 40
    %v400 = vpop.permute.xlu0 %399
    %401 = vrot.lane.b32.xlu0 %v56, 40
    %v402 = vpop.permute.xlu0 %401
    %403 = vrot.lane.b32.xlu0 %v57, 40
    %v404 = vpop.permute.xlu0 %403
    %405 = vrot.lane.b32.xlu0 %v58, 40
    %v406 = vpop.permute.xlu0 %405
    %407 = vrot.lane.b32.xlu0 %v59, 40
    %v408 = vpop.permute.xlu0 %407
    %409 = vrot.lane.b32.xlu0 %v60, 40
    %v410 = vpop.permute.xlu0 %409
    %411 = vrot.lane.b32.xlu0 %v61, 40
    %v412 = vpop.permute.xlu0 %411
    %413 = vrot.lane.b32.xlu0 %v62, 40
    %v414 = vpop.permute.xlu0 %413
    %415 = vrot.lane.b32.xlu0 %v63, 40
    %v416 = vpop.permute.xlu0 %415
    %417 = vrot.lane.b32.xlu0 %v64, 40
    %v418 = vpop.permute.xlu0 %417
    %419 = vrot.lane.b32.xlu0 %v65, 40
    %v420 = vpop.permute.xlu0 %419
    %421 = vrot.lane.b32.xlu0 %v66, 40
    %v422 = vpop.permute.xlu0 %421
    %423 = vrot.lane.b32.xlu0 %v67, 40
    %v424 = vpop.permute.xlu0 %423
    %425 = vrot.lane.b32.xlu0 %v68, 40
    %v426 = vpop.permute.xlu0 %425
    %427 = vrot.lane.b32.xlu0 %v69, 40
    %v428 = vpop.permute.xlu0 %427
    %429 = vrot.lane.b32.xlu0 %v70, 40
    %v430 = vpop.permute.xlu0 %429
    %431 = vrot.lane.b32.xlu0 %v71, 40
    %v432 = vpop.permute.xlu0 %431
    %433 = vrot.lane.b32.xlu0 %v72, 40
    %v434 = vpop.permute.xlu0 %433
    %435 = vrot.lane.b32.xlu0 %v73, 40
    %v436 = vpop.permute.xlu0 %435
    %437 = vrot.lane.b32.xlu0 %v74, 40
    %v438 = vpop.permute.xlu0 %437
    %439 = vrot.lane.b32.xlu0 %v75, 40
    %v440 = vpop.permute.xlu0 %439
    %441 = vrot.lane.b32.xlu0 %v76, 40
    %v442 = vpop.permute.xlu0 %441
    %443 = vrot.lane.b32.xlu0 %v77, 40
    %v444 = vpop.permute.xlu0 %443
    %445 = vrot.lane.b32.xlu0 %v78, 40
    %v446 = vpop.permute.xlu0 %445
    %447 = vrot.lane.b32.xlu0 %v87, 40
    %v448 = vpop.permute.xlu0 %447
    %449 = vrot.lane.b32.xlu0 %v88, 40
    %v450 = vpop.permute.xlu0 %449
    %451 = vrot.lane.b32.xlu0 %v89, 40
    %v452 = vpop.permute.xlu0 %451
    %453 = vrot.lane.b32.xlu0 %v90, 40
    %v454 = vpop.permute.xlu0 %453
    %455 = vrot.lane.b32.xlu0 %v91, 40
    %v456 = vpop.permute.xlu0 %455
    %457 = vrot.lane.b32.xlu0 %v92, 40
    %v458 = vpop.permute.xlu0 %457
    %459 = vrot.lane.b32.xlu0 %v93, 40
    %v460 = vpop.permute.xlu0 %459
    %461 = vrot.lane.b32.xlu0 %v94, 40
    %v462 = vpop.permute.xlu0 %461
    %463 = vrot.lane.b32.xlu0 %v95, 40
    %v464 = vpop.permute.xlu0 %463
    %465 = vrot.lane.b32.xlu0 %v96, 40
    %v466 = vpop.permute.xlu0 %465
    %467 = vrot.lane.b32.xlu0 %v97, 40
    %v468 = vpop.permute.xlu0 %467
    %469 = vrot.lane.b32.xlu0 %v98, 40
    %v470 = vpop.permute.xlu0 %469
    %471 = vrot.lane.b32.xlu0 %v99, 40
    %v472 = vpop.permute.xlu0 %471
    %473 = vrot.lane.b32.xlu0 %v100, 40
    %v474 = vpop.permute.xlu0 %473
    %475 = vrot.lane.b32.xlu0 %v101, 40
    %v476 = vpop.permute.xlu0 %475
    %477 = vrot.lane.b32.xlu0 %v102, 40
    %v478 = vpop.permute.xlu0 %477
    %479 = vrot.lane.b32.xlu0 %v103, 40
    %v480 = vpop.permute.xlu0 %479
    %481 = vrot.lane.b32.xlu0 %v104, 40
    %v482 = vpop.permute.xlu0 %481
    %483 = vrot.lane.b32.xlu0 %v105, 40
    %v484 = vpop.permute.xlu0 %483
    %485 = vrot.lane.b32.xlu0 %v106, 40
    %v486 = vpop.permute.xlu0 %485
    %487 = vrot.lane.b32.xlu0 %v107, 40
    %v488 = vpop.permute.xlu0 %487
    %489 = vrot.lane.b32.xlu0 %v108, 40
    %v490 = vpop.permute.xlu0 %489
    %491 = vrot.lane.b32.xlu0 %v109, 40
    %v492 = vpop.permute.xlu0 %491
    %493 = vrot.lane.b32.xlu0 %v110, 40
    %v494 = vpop.permute.xlu0 %493
    %495 = vrot.lane.b32.xlu0 %v111, 40
    %v496 = vpop.permute.xlu0 %495
    %497 = vrot.lane.b32.xlu0 %v112, 40
    %v498 = vpop.permute.xlu0 %497
    %499 = vrot.lane.b32.xlu0 %v113, 40
    %v500 = vpop.permute.xlu0 %499
    %501 = vrot.lane.b32.xlu0 %v114, 40
    %v502 = vpop.permute.xlu0 %501
    %503 = vrot.lane.b32.xlu0 %v115, 40
    %v504 = vpop.permute.xlu0 %503
    %505 = vrot.lane.b32.xlu0 %v116, 40
    %v506 = vpop.permute.xlu0 %505
    %507 = vrot.lane.b32.xlu0 %v117, 40
    %v508 = vpop.permute.xlu0 %507
    %509 = vrot.lane.b32.xlu0 %v118, 40
    %v510 = vpop.permute.xlu0 %509
    %579 = vrot.lane.b32.xlu0 %v49, 60
    %v580 = vpop.permute.xlu0 %579
    %581 = vrot.lane.b32.xlu0 %v50, 60
    %v582 = vpop.permute.xlu0 %581
    %583 = vrot.lane.b32.xlu0 %v51, 60
    %v584 = vpop.permute.xlu0 %583
    %585 = vrot.lane.b32.xlu0 %v52, 60
    %v586 = vpop.permute.xlu0 %585
    %587 = vrot.lane.b32.xlu0 %v53, 60
    %v588 = vpop.permute.xlu0 %587
    %589 = vrot.lane.b32.xlu0 %v54, 60
    %v590 = vpop.permute.xlu0 %589
    %591 = vrot.lane.b32.xlu0 %v55, 60
    %v592 = vpop.permute.xlu0 %591
    %593 = vrot.lane.b32.xlu0 %v56, 60
    %v594 = vpop.permute.xlu0 %593
    %595 = vrot.lane.b32.xlu0 %v57, 60
    %v596 = vpop.permute.xlu0 %595
    %597 = vrot.lane.b32.xlu0 %v58, 60
    %v598 = vpop.permute.xlu0 %597
    %599 = vrot.lane.b32.xlu0 %v59, 60
    %v600 = vpop.permute.xlu0 %599
    %601 = vrot.lane.b32.xlu0 %v60, 60
    %v602 = vpop.permute.xlu0 %601
    %603 = vrot.lane.b32.xlu0 %v61, 60
    %v604 = vpop.permute.xlu0 %603
    %605 = vrot.lane.b32.xlu0 %v62, 60
    %v606 = vpop.permute.xlu0 %605
    %607 = vrot.lane.b32.xlu0 %v63, 60
    %v608 = vpop.permute.xlu0 %607
    %609 = vrot.lane.b32.xlu0 %v64, 60
    %v610 = vpop.permute.xlu0 %609
    %611 = vrot.lane.b32.xlu0 %v65, 60
    %v612 = vpop.permute.xlu0 %611
    %613 = vrot.lane.b32.xlu0 %v66, 60
    %v614 = vpop.permute.xlu0 %613
    %615 = vrot.lane.b32.xlu0 %v67, 60
    %v616 = vpop.permute.xlu0 %615
    %617 = vrot.lane.b32.xlu0 %v68, 60
    %v618 = vpop.permute.xlu0 %617
    %619 = vrot.lane.b32.xlu0 %v69, 60
    %v620 = vpop.permute.xlu0 %619
    %621 = vrot.lane.b32.xlu0 %v70, 60
    %v622 = vpop.permute.xlu0 %621
    %623 = vrot.lane.b32.xlu0 %v71, 60
    %v624 = vpop.permute.xlu0 %623
    %625 = vrot.lane.b32.xlu0 %v72, 60
    %v626 = vpop.permute.xlu0 %625
    %627 = vrot.lane.b32.xlu0 %v73, 60
    %v628 = vpop.permute.xlu0 %627
    %629 = vrot.lane.b32.xlu0 %v74, 60
    %v630 = vpop.permute.xlu0 %629
    %631 = vrot.lane.b32.xlu0 %v75, 60
    %v632 = vpop.permute.xlu0 %631
    %633 = vrot.lane.b32.xlu0 %v76, 60
    %v634 = vpop.permute.xlu0 %633
    %635 = vrot.lane.b32.xlu0 %v77, 60
    %v636 = vpop.permute.xlu0 %635
    %637 = vrot.lane.b32.xlu0 %v78, 60
    %v638 = vpop.permute.xlu0 %637
    %639 = vrot.lane.b32.xlu0 %v79, 60
    %v640 = vpop.permute.xlu0 %639
    %641 = vrot.lane.b32.xlu0 %v80, 60
    %v642 = vpop.permute.xlu0 %641
    %643 = vrot.lane.b32.xlu0 %v89, 60
    %v644 = vpop.permute.xlu0 %643
    %645 = vrot.lane.b32.xlu0 %v90, 60
    %v646 = vpop.permute.xlu0 %645
    %647 = vrot.lane.b32.xlu0 %v91, 60
    %v648 = vpop.permute.xlu0 %647
    %649 = vrot.lane.b32.xlu0 %v92, 60
    %v650 = vpop.permute.xlu0 %649
    %651 = vrot.lane.b32.xlu0 %v93, 60
    %v652 = vpop.permute.xlu0 %651
    %653 = vrot.lane.b32.xlu0 %v94, 60
    %v654 = vpop.permute.xlu0 %653
    %655 = vrot.lane.b32.xlu0 %v95, 60
    %v656 = vpop.permute.xlu0 %655
    %657 = vrot.lane.b32.xlu0 %v96, 60
    %v658 = vpop.permute.xlu0 %657
    %659 = vrot.lane.b32.xlu0 %v97, 60
    %v660 = vpop.permute.xlu0 %659
    %661 = vrot.lane.b32.xlu0 %v98, 60
    %v662 = vpop.permute.xlu0 %661
    %663 = vrot.lane.b32.xlu0 %v99, 60
    %v664 = vpop.permute.xlu0 %663
    %665 = vrot.lane.b32.xlu0 %v100, 60
    %v666 = vpop.permute.xlu0 %665
    %667 = vrot.lane.b32.xlu0 %v101, 60
    %v668 = vpop.permute.xlu0 %667
    %669 = vrot.lane.b32.xlu0 %v102, 60
    %v670 = vpop.permute.xlu0 %669
    %671 = vrot.lane.b32.xlu0 %v103, 60
    %v672 = vpop.permute.xlu0 %671
    %673 = vrot.lane.b32.xlu0 %v104, 60
    %v674 = vpop.permute.xlu0 %673
    %675 = vrot.lane.b32.xlu0 %v105, 60
    %v676 = vpop.permute.xlu0 %675
    %677 = vrot.lane.b32.xlu0 %v106, 60
    %v678 = vpop.permute.xlu0 %677
    %679 = vrot.lane.b32.xlu0 %v107, 60
    %v680 = vpop.permute.xlu0 %679
    %681 = vrot.lane.b32.xlu0 %v108, 60
    %v682 = vpop.permute.xlu0 %681
    %683 = vrot.lane.b32.xlu0 %v109, 60
    %v684 = vpop.permute.xlu0 %683
    %685 = vrot.lane.b32.xlu0 %v110, 60
    %v686 = vpop.permute.xlu0 %685
    %687 = vrot.lane.b32.xlu0 %v111, 60
    %v688 = vpop.permute.xlu0 %687
    %689 = vrot.lane.b32.xlu0 %v112, 60
    %v690 = vpop.permute.xlu0 %689
    %691 = vrot.lane.b32.xlu0 %v113, 60
    %v692 = vpop.permute.xlu0 %691
    %693 = vrot.lane.b32.xlu0 %v114, 60
    %v694 = vpop.permute.xlu0 %693
    %695 = vrot.lane.b32.xlu0 %v115, 60
    %v696 = vpop.permute.xlu0 %695
    %697 = vrot.lane.b32.xlu0 %v116, 60
    %v698 = vpop.permute.xlu0 %697
    %699 = vrot.lane.b32.xlu0 %v117, 60
    %v700 = vpop.permute.xlu0 %699
    %701 = vrot.lane.b32.xlu0 %v118, 60
    %v702 = vpop.permute.xlu0 %701
    %703 = vrot.lane.b32.xlu0 %v119, 60
    %v704 = vpop.permute.xlu0 %703
    %705 = vrot.lane.b32.xlu0 %v120, 60
    %v706 = vpop.permute.xlu0 %705
    %775 = vrot.lane.b32.xlu0 %v51, 80
    %v776 = vpop.permute.xlu0 %775
    %777 = vrot.lane.b32.xlu0 %v52, 80
    %v778 = vpop.permute.xlu0 %777
    %779 = vrot.lane.b32.xlu0 %v53, 80
    %v780 = vpop.permute.xlu0 %779
    %781 = vrot.lane.b32.xlu0 %v54, 80
    %v782 = vpop.permute.xlu0 %781
    %783 = vrot.lane.b32.xlu0 %v55, 80
    %v784 = vpop.permute.xlu0 %783
    %785 = vrot.lane.b32.xlu0 %v56, 80
    %v786 = vpop.permute.xlu0 %785
    %787 = vrot.lane.b32.xlu0 %v57, 80
    %v788 = vpop.permute.xlu0 %787
    %789 = vrot.lane.b32.xlu0 %v58, 80
    %v790 = vpop.permute.xlu0 %789
    %791 = vrot.lane.b32.xlu0 %v59, 80
    %v792 = vpop.permute.xlu0 %791
    %793 = vrot.lane.b32.xlu0 %v60, 80
    %v794 = vpop.permute.xlu0 %793
    %795 = vrot.lane.b32.xlu0 %v61, 80
    %v796 = vpop.permute.xlu0 %795
    %797 = vrot.lane.b32.xlu0 %v62, 80
    %v798 = vpop.permute.xlu0 %797
    %799 = vrot.lane.b32.xlu0 %v63, 80
    %v800 = vpop.permute.xlu0 %799
    %801 = vrot.lane.b32.xlu0 %v64, 80
    %v802 = vpop.permute.xlu0 %801
    %803 = vrot.lane.b32.xlu0 %v65, 80
    %v804 = vpop.permute.xlu0 %803
    %805 = vrot.lane.b32.xlu0 %v66, 80
    %v806 = vpop.permute.xlu0 %805
    %807 = vrot.lane.b32.xlu0 %v67, 80
    %v808 = vpop.permute.xlu0 %807
    %809 = vrot.lane.b32.xlu0 %v68, 80
    %v810 = vpop.permute.xlu0 %809
    %811 = vrot.lane.b32.xlu0 %v69, 80
    %v812 = vpop.permute.xlu0 %811
    %813 = vrot.lane.b32.xlu0 %v70, 80
    %v814 = vpop.permute.xlu0 %813
    %815 = vrot.lane.b32.xlu0 %v71, 80
    %v816 = vpop.permute.xlu0 %815
    %817 = vrot.lane.b32.xlu0 %v72, 80
    %v818 = vpop.permute.xlu0 %817
    %819 = vrot.lane.b32.xlu0 %v73, 80
    %v820 = vpop.permute.xlu0 %819
    %821 = vrot.lane.b32.xlu0 %v74, 80
    %v822 = vpop.permute.xlu0 %821
    %823 = vrot.lane.b32.xlu0 %v75, 80
    %v824 = vpop.permute.xlu0 %823
    %825 = vrot.lane.b32.xlu0 %v76, 80
    %v826 = vpop.permute.xlu0 %825
    %827 = vrot.lane.b32.xlu0 %v77, 80
    %v828 = vpop.permute.xlu0 %827
    %829 = vrot.lane.b32.xlu0 %v78, 80
    %v830 = vpop.permute.xlu0 %829
    %831 = vrot.lane.b32.xlu0 %v79, 80
    %v832 = vpop.permute.xlu0 %831
    %833 = vrot.lane.b32.xlu0 %v80, 80
    %v834 = vpop.permute.xlu0 %833
    %835 = vrot.lane.b32.xlu0 %v81, 80
    %v836 = vpop.permute.xlu0 %835
    %837 = vrot.lane.b32.xlu0 %v82, 80
    %v838 = vpop.permute.xlu0 %837
    %839 = vrot.lane.b32.xlu0 %v91, 80
    %v840 = vpop.permute.xlu0 %839
    %841 = vrot.lane.b32.xlu0 %v92, 80
    %v842 = vpop.permute.xlu0 %841
    %843 = vrot.lane.b32.xlu0 %v93, 80
    %v844 = vpop.permute.xlu0 %843
    %845 = vrot.lane.b32.xlu0 %v94, 80
    %v846 = vpop.permute.xlu0 %845
    %847 = vrot.lane.b32.xlu0 %v95, 80
    %v848 = vpop.permute.xlu0 %847
    %849 = vrot.lane.b32.xlu0 %v96, 80
    %v850 = vpop.permute.xlu0 %849
    %851 = vrot.lane.b32.xlu0 %v97, 80
    %v852 = vpop.permute.xlu0 %851
    %853 = vrot.lane.b32.xlu0 %v98, 80
    %v854 = vpop.permute.xlu0 %853
    %855 = vrot.lane.b32.xlu0 %v99, 80
    %v856 = vpop.permute.xlu0 %855
    %857 = vrot.lane.b32.xlu0 %v100, 80
    %v858 = vpop.permute.xlu0 %857
    %859 = vrot.lane.b32.xlu0 %v101, 80
    %v860 = vpop.permute.xlu0 %859
    %861 = vrot.lane.b32.xlu0 %v102, 80
    %v862 = vpop.permute.xlu0 %861
    %863 = vrot.lane.b32.xlu0 %v103, 80
    %v864 = vpop.permute.xlu0 %863
    %865 = vrot.lane.b32.xlu0 %v104, 80
    %v866 = vpop.permute.xlu0 %865
    %867 = vrot.lane.b32.xlu0 %v105, 80
    %v868 = vpop.permute.xlu0 %867
    %869 = vrot.lane.b32.xlu0 %v106, 80
    %v870 = vpop.permute.xlu0 %869
    %871 = vrot.lane.b32.xlu0 %v107, 80
    %v872 = vpop.permute.xlu0 %871
    %873 = vrot.lane.b32.xlu0 %v108, 80
    %v874 = vpop.permute.xlu0 %873
    %875 = vrot.lane.b32.xlu0 %v109, 80
    %v876 = vpop.permute.xlu0 %875
    %877 = vrot.lane.b32.xlu0 %v110, 80
    %v878 = vpop.permute.xlu0 %877
    %879 = vrot.lane.b32.xlu0 %v111, 80
    %v880 = vpop.permute.xlu0 %879
    %881 = vrot.lane.b32.xlu0 %v112, 80
    %v882 = vpop.permute.xlu0 %881
    %883 = vrot.lane.b32.xlu0 %v113, 80
    %v884 = vpop.permute.xlu0 %883
    %885 = vrot.lane.b32.xlu0 %v114, 80
    %v886 = vpop.permute.xlu0 %885
    %887 = vrot.lane.b32.xlu0 %v115, 80
    %v888 = vpop.permute.xlu0 %887
    %889 = vrot.lane.b32.xlu0 %v116, 80
    %v890 = vpop.permute.xlu0 %889
    %891 = vrot.lane.b32.xlu0 %v117, 80
    %v892 = vpop.permute.xlu0 %891
    %893 = vrot.lane.b32.xlu0 %v118, 80
    %v894 = vpop.permute.xlu0 %893
    %895 = vrot.lane.b32.xlu0 %v119, 80
    %v896 = vpop.permute.xlu0 %895
    %897 = vrot.lane.b32.xlu0 %v120, 80
    %v898 = vpop.permute.xlu0 %897
    %899 = vrot.lane.b32.xlu0 %v121, 80
    %v900 = vpop.permute.xlu0 %899
    %901 = vrot.lane.b32.xlu0 %v122, 80
    %v902 = vpop.permute.xlu0 %901
    %vm967 = vcmask 162816
    %v968 = vsel %vm967, %v43, %v188
    %v969 = vsel %vm967, %v44, %v190
    %v970 = vsel %vm967, %v45, %v192
    %v971 = vsel %vm967, %v46, %v194
    %v972 = vsel %vm967, %v47, %v196
    %v973 = vsel %vm967, %v48, %v198
    %v974 = vsel %vm967, %v49, %v200
    %v975 = vsel %vm967, %v50, %v202
    %v976 = vsel %vm967, %v51, %v204
    %v977 = vsel %vm967, %v52, %v206
    %v978 = vsel %vm967, %v53, %v208
    %v979 = vsel %vm967, %v54, %v210
    %v980 = vsel %vm967, %v55, %v212
    %v981 = vsel %vm967, %v56, %v214
    %v982 = vsel %vm967, %v57, %v216
    %v983 = vsel %vm967, %v58, %v218
    %v984 = vsel %vm967, %v59, %v220
    %v985 = vsel %vm967, %v60, %v222
    %v986 = vsel %vm967, %v61, %v224
    %v987 = vsel %vm967, %v62, %v226
    %v988 = vsel %vm967, %v63, %v228
    %v989 = vsel %vm967, %v64, %v230
    %v990 = vsel %vm967, %v65, %v232
    %v991 = vsel %vm967, %v66, %v234
    %v992 = vsel %vm967, %v67, %v236
    %v993 = vsel %vm967, %v68, %v238
    %v994 = vsel %vm967, %v69, %v240
    %v995 = vsel %vm967, %v70, %v242
    %v996 = vsel %vm967, %v71, %v244
    %v997 = vsel %vm967, %v72, %v246
    %v998 = vsel %vm967, %v73, %v248
    %v999 = vsel %vm967, %v74, %v250
    %v1000 = vsel %vm967, %v83, %v252
    %v1001 = vsel %vm967, %v84, %v254
    %v1002 = vsel %vm967, %v85, %v256
    %v1003 = vsel %vm967, %v86, %v258
    %v1004 = vsel %vm967, %v87, %v260
    %v1005 = vsel %vm967, %v88, %v262
    %v1006 = vsel %vm967, %v89, %v264
    %v1007 = vsel %vm967, %v90, %v266
    %v1008 = vsel %vm967, %v91, %v268
    %v1009 = vsel %vm967, %v92, %v270
    %v1010 = vsel %vm967, %v93, %v272
    %v1011 = vsel %vm967, %v94, %v274
    %v1012 = vsel %vm967, %v95, %v276
    %v1013 = vsel %vm967, %v96, %v278
    %v1014 = vsel %vm967, %v97, %v280
    %v1015 = vsel %vm967, %v98, %v282
    %v1016 = vsel %vm967, %v99, %v284
    %v1017 = vsel %vm967, %v100, %v286
    %v1018 = vsel %vm967, %v101, %v288
    %v1019 = vsel %vm967, %v102, %v290
    %v1020 = vsel %vm967, %v103, %v292
    %v1021 = vsel %vm967, %v104, %v294
    %v1022 = vsel %vm967, %v105, %v296
    %v1023 = vsel %vm967, %v106, %v298
    %v1024 = vsel %vm967, %v107, %v300
    %v1025 = vsel %vm967, %v108, %v302
    %v1026 = vsel %vm967, %v109, %v304
    %v1027 = vsel %vm967, %v110, %v306
    %v1028 = vsel %vm967, %v111, %v308
    %v1029 = vsel %vm967, %v112, %v310
    %v1030 = vsel %vm967, %v113, %v312
    %v1031 = vsel %vm967, %v114, %v314
    %vm1032 = vcmask 326656
    %v1033 = vsel %vm1032, %v968, %v384
    %v1034 = vsel %vm1032, %v969, %v386
    %v1035 = vsel %vm1032, %v970, %v388
    %v1036 = vsel %vm1032, %v971, %v390
    %v1037 = vsel %vm1032, %v972, %v392
    %v1038 = vsel %vm1032, %v973, %v394
    %v1039 = vsel %vm1032, %v974, %v396
    %v1040 = vsel %vm1032, %v975, %v398
    %v1041 = vsel %vm1032, %v976, %v400
    %v1042 = vsel %vm1032, %v977, %v402
    %v1043 = vsel %vm1032, %v978, %v404
    %v1044 = vsel %vm1032, %v979, %v406
    %v1045 = vsel %vm1032, %v980, %v408
    %v1046 = vsel %vm1032, %v981, %v410
    %v1047 = vsel %vm1032, %v982, %v412
    %v1048 = vsel %vm1032, %v983, %v414
    %v1049 = vsel %vm1032, %v984, %v416
    %v1050 = vsel %vm1032, %v985, %v418
    %v1051 = vsel %vm1032, %v986, %v420
    %v1052 = vsel %vm1032, %v987, %v422
    %v1053 = vsel %vm1032, %v988, %v424
    %v1054 = vsel %vm1032, %v989, %v426
    %v1055 = vsel %vm1032, %v990, %v428
    %v1056 = vsel %vm1032, %v991, %v430
    %v1057 = vsel %vm1032, %v992, %v432
    %v1058 = vsel %vm1032, %v993, %v434
    %v1059 = vsel %vm1032, %v994, %v436
    %v1060 = vsel %vm1032, %v995, %v438
    %v1061 = vsel %vm1032, %v996, %v440
    %v1062 = vsel %vm1032, %v997, %v442
    %v1063 = vsel %vm1032, %v998, %v444
    %v1064 = vsel %vm1032, %v999, %v446
    %v1065 = vsel %vm1032, %v1000, %v448
    %v1066 = vsel %vm1032, %v1001, %v450
    %v1067 = vsel %vm1032, %v1002, %v452
    %v1068 = vsel %vm1032, %v1003, %v454
    %v1069 = vsel %vm1032, %v1004, %v456
    %v1070 = vsel %vm1032, %v1005, %v458
    %v1071 = vsel %vm1032, %v1006, %v460
    %v1072 = vsel %vm1032, %v1007, %v462
    %v1073 = vsel %vm1032, %v1008, %v464
    %v1074 = vsel %vm1032, %v1009, %v466
    %v1075 = vsel %vm1032, %v1010, %v468
    %v1076 = vsel %vm1032, %v1011, %v470
    %v1077 = vsel %vm1032, %v1012, %v472
    %v1078 = vsel %vm1032, %v1013, %v474
    %v1079 = vsel %vm1032, %v1014, %v476
    %v1080 = vsel %vm1032, %v1015, %v478
    %v1081 = vsel %vm1032, %v1016, %v480
    %v1082 = vsel %vm1032, %v1017, %v482
    %v1083 = vsel %vm1032, %v1018, %v484
    %v1084 = vsel %vm1032, %v1019, %v486
    %v1085 = vsel %vm1032, %v1020, %v488
    %v1086 = vsel %vm1032, %v1021, %v490
    %v1087 = vsel %vm1032, %v1022, %v492
    %v1088 = vsel %vm1032, %v1023, %v494
    %v1089 = vsel %vm1032, %v1024, %v496
    %v1090 = vsel %vm1032, %v1025, %v498
    %v1091 = vsel %vm1032, %v1026, %v500
    %v1092 = vsel %vm1032, %v1027, %v502
    %v1093 = vsel %vm1032, %v1028, %v504
    %v1094 = vsel %vm1032, %v1029, %v506
    %v1095 = vsel %vm1032, %v1030, %v508
    %v1096 = vsel %vm1032, %v1031, %v510
    %vm1097 = vcmask 490496
    %v1098 = vsel %vm1097, %v1033, %v580
    %v1099 = vsel %vm1097, %v1034, %v582
    %v1100 = vsel %vm1097, %v1035, %v584
    %v1101 = vsel %vm1097, %v1036, %v586
    %v1102 = vsel %vm1097, %v1037, %v588
    %v1103 = vsel %vm1097, %v1038, %v590
    %v1104 = vsel %vm1097, %v1039, %v592
    %v1105 = vsel %vm1097, %v1040, %v594
    %v1106 = vsel %vm1097, %v1041, %v596
    %v1107 = vsel %vm1097, %v1042, %v598
    %v1108 = vsel %vm1097, %v1043, %v600
    %v1109 = vsel %vm1097, %v1044, %v602
    %v1110 = vsel %vm1097, %v1045, %v604
    %v1111 = vsel %vm1097, %v1046, %v606
    %v1112 = vsel %vm1097, %v1047, %v608
    %v1113 = vsel %vm1097, %v1048, %v610
    %v1114 = vsel %vm1097, %v1049, %v612
    %v1115 = vsel %vm1097, %v1050, %v614
    %v1116 = vsel %vm1097, %v1051, %v616
    %v1117 = vsel %vm1097, %v1052, %v618
    %v1118 = vsel %vm1097, %v1053, %v620
    %v1119 = vsel %vm1097, %v1054, %v622
    %v1120 = vsel %vm1097, %v1055, %v624
    %v1121 = vsel %vm1097, %v1056, %v626
    %v1122 = vsel %vm1097, %v1057, %v628
    %v1123 = vsel %vm1097, %v1058, %v630
    %v1124 = vsel %vm1097, %v1059, %v632
    %v1125 = vsel %vm1097, %v1060, %v634
    %v1126 = vsel %vm1097, %v1061, %v636
    %v1127 = vsel %vm1097, %v1062, %v638
    %v1128 = vsel %vm1097, %v1063, %v640
    %v1129 = vsel %vm1097, %v1064, %v642
    %v1130 = vsel %vm1097, %v1065, %v644
    %v1131 = vsel %vm1097, %v1066, %v646
    %v1132 = vsel %vm1097, %v1067, %v648
    %v1133 = vsel %vm1097, %v1068, %v650
    %v1134 = vsel %vm1097, %v1069, %v652
    %v1135 = vsel %vm1097, %v1070, %v654
    %v1136 = vsel %vm1097, %v1071, %v656
    %v1137 = vsel %vm1097, %v1072, %v658
    %v1138 = vsel %vm1097, %v1073, %v660
    %v1139 = vsel %vm1097, %v1074, %v662
    %v1140 = vsel %vm1097, %v1075, %v664
    %v1141 = vsel %vm1097, %v1076, %v666
    %v1142 = vsel %vm1097, %v1077, %v668
    %v1143 = vsel %vm1097, %v1078, %v670
    %v1144 = vsel %vm1097, %v1079, %v672
    %v1145 = vsel %vm1097, %v1080, %v674
    %v1146 = vsel %vm1097, %v1081, %v676
    %v1147 = vsel %vm1097, %v1082, %v678
    %v1148 = vsel %vm1097, %v1083, %v680
    %v1149 = vsel %vm1097, %v1084, %v682
    %v1150 = vsel %vm1097, %v1085, %v684
    %v1151 = vsel %vm1097, %v1086, %v686
    %v1152 = vsel %vm1097, %v1087, %v688
    %v1153 = vsel %vm1097, %v1088, %v690
    %v1154 = vsel %vm1097, %v1089, %v692
    %v1155 = vsel %vm1097, %v1090, %v694
    %v1156 = vsel %vm1097, %v1091, %v696
    %v1157 = vsel %vm1097, %v1092, %v698
    %v1158 = vsel %vm1097, %v1093, %v700
    %v1159 = vsel %vm1097, %v1094, %v702
    %v1160 = vsel %vm1097, %v1095, %v704
    %v1161 = vsel %vm1097, %v1096, %v706
    %vm1162 = vcmask 654336
    %v1163 = vsel %vm1162, %v1098, %v776
    %v1164 = vsel %vm1162, %v1099, %v778
    %v1165 = vsel %vm1162, %v1100, %v780
    %v1166 = vsel %vm1162, %v1101, %v782
    %v1167 = vsel %vm1162, %v1102, %v784
    %v1168 = vsel %vm1162, %v1103, %v786
    %v1169 = vsel %vm1162, %v1104, %v788
    %v1170 = vsel %vm1162, %v1105, %v790
    %v1171 = vsel %vm1162, %v1106, %v792
    %v1172 = vsel %vm1162, %v1107, %v794
    %v1173 = vsel %vm1162, %v1108, %v796
    %v1174 = vsel %vm1162, %v1109, %v798
    %v1175 = vsel %vm1162, %v1110, %v800
    %v1176 = vsel %vm1162, %v1111, %v802
    %v1177 = vsel %vm1162, %v1112, %v804
    %v1178 = vsel %vm1162, %v1113, %v806
    %v1179 = vsel %vm1162, %v1114, %v808
    %v1180 = vsel %vm1162, %v1115, %v810
    %v1181 = vsel %vm1162, %v1116, %v812
    %v1182 = vsel %vm1162, %v1117, %v814
    %v1183 = vsel %vm1162, %v1118, %v816
    %v1184 = vsel %vm1162, %v1119, %v818
    %v1185 = vsel %vm1162, %v1120, %v820
    %v1186 = vsel %vm1162, %v1121, %v822
    %v1187 = vsel %vm1162, %v1122, %v824
    %v1188 = vsel %vm1162, %v1123, %v826
    %v1189 = vsel %vm1162, %v1124, %v828
    %v1190 = vsel %vm1162, %v1125, %v830
    %v1191 = vsel %vm1162, %v1126, %v832
    %v1192 = vsel %vm1162, %v1127, %v834
    %v1193 = vsel %vm1162, %v1128, %v836
    %v1194 = vsel %vm1162, %v1129, %v838
    %v1195 = vsel %vm1162, %v1130, %v840
    %v1196 = vsel %vm1162, %v1131, %v842
    %v1197 = vsel %vm1162, %v1132, %v844
    %v1198 = vsel %vm1162, %v1133, %v846
    %v1199 = vsel %vm1162, %v1134, %v848
    %v1200 = vsel %vm1162, %v1135, %v850
    %v1201 = vsel %vm1162, %v1136, %v852
    %v1202 = vsel %vm1162, %v1137, %v854
    %v1203 = vsel %vm1162, %v1138, %v856
    %v1204 = vsel %vm1162, %v1139, %v858
    %v1205 = vsel %vm1162, %v1140, %v860
    %v1206 = vsel %vm1162, %v1141, %v862
    %v1207 = vsel %vm1162, %v1142, %v864
    %v1208 = vsel %vm1162, %v1143, %v866
    %v1209 = vsel %vm1162, %v1144, %v868
    %v1210 = vsel %vm1162, %v1145, %v870
    %v1211 = vsel %vm1162, %v1146, %v872
    %v1212 = vsel %vm1162, %v1147, %v874
    %v1213 = vsel %vm1162, %v1148, %v876
    %v1214 = vsel %vm1162, %v1149, %v878
    %v1215 = vsel %vm1162, %v1150, %v880
    %v1216 = vsel %vm1162, %v1151, %v882
    %v1217 = vsel %vm1162, %v1152, %v884
    %v1218 = vsel %vm1162, %v1153, %v886
    %v1219 = vsel %vm1162, %v1154, %v888
    %v1220 = vsel %vm1162, %v1155, %v890
    %v1221 = vsel %vm1162, %v1156, %v892
    %v1222 = vsel %vm1162, %v1157, %v894
    %v1223 = vsel %vm1162, %v1158, %v896
    %v1224 = vsel %vm1162, %v1159, %v898
    %v1225 = vsel %vm1162, %v1160, %v900
    %v1226 = vsel %vm1162, %v1161, %v902
    %vm1227 = vcmask 818176
    %v1228 = vsel %vm1227, %v1163, 0.0
    %v1229 = vsel %vm1227, %v1164, 0.0
    %v1230 = vsel %vm1227, %v1165, 0.0
    %v1231 = vsel %vm1227, %v1166, 0.0
    %v1232 = vsel %vm1227, %v1167, 0.0
    %v1233 = vsel %vm1227, %v1168, 0.0
    %v1234 = vsel %vm1227, %v1169, 0.0
    %v1235 = vsel %vm1227, %v1170, 0.0
    %v1236 = vsel %vm1227, %v1171, 0.0
    %v1237 = vsel %vm1227, %v1172, 0.0
    %v1238 = vsel %vm1227, %v1173, 0.0
    %v1239 = vsel %vm1227, %v1174, 0.0
    %v1240 = vsel %vm1227, %v1175, 0.0
    %v1241 = vsel %vm1227, %v1176, 0.0
    %v1242 = vsel %vm1227, %v1177, 0.0
    %v1243 = vsel %vm1227, %v1178, 0.0
    %v1244 = vsel %vm1227, %v1179, 0.0
    %v1245 = vsel %vm1227, %v1180, 0.0
    %v1246 = vsel %vm1227, %v1181, 0.0
    %v1247 = vsel %vm1227, %v1182, 0.0
    %v1248 = vsel %vm1227, %v1183, 0.0
    %v1249 = vsel %vm1227, %v1184, 0.0
    %v1250 = vsel %vm1227, %v1185, 0.0
    %v1251 = vsel %vm1227, %v1186, 0.0
    %v1252 = vsel %vm1227, %v1187, 0.0
    %v1253 = vsel %vm1227, %v1188, 0.0
    %v1254 = vsel %vm1227, %v1189, 0.0
    %v1255 = vsel %vm1227, %v1190, 0.0
    %v1256 = vsel %vm1227, %v1191, 0.0
    %v1257 = vsel %vm1227, %v1192, 0.0
    %v1258 = vsel %vm1227, %v1193, 0.0
    %v1259 = vsel %vm1227, %v1194, 0.0
    %v1260 = vsel %vm1227, %v1195, 0.0
    %v1261 = vsel %vm1227, %v1196, 0.0
    %v1262 = vsel %vm1227, %v1197, 0.0
    %v1263 = vsel %vm1227, %v1198, 0.0
    %v1264 = vsel %vm1227, %v1199, 0.0
    %v1265 = vsel %vm1227, %v1200, 0.0
    %v1266 = vsel %vm1227, %v1201, 0.0
    %v1267 = vsel %vm1227, %v1202, 0.0
    %v1268 = vsel %vm1227, %v1203, 0.0
    %v1269 = vsel %vm1227, %v1204, 0.0
    %v1270 = vsel %vm1227, %v1205, 0.0
    %v1271 = vsel %vm1227, %v1206, 0.0
    %v1272 = vsel %vm1227, %v1207, 0.0
    %v1273 = vsel %vm1227, %v1208, 0.0
    %v1274 = vsel %vm1227, %v1209, 0.0
    %v1275 = vsel %vm1227, %v1210, 0.0
    %v1276 = vsel %vm1227, %v1211, 0.0
    %v1277 = vsel %vm1227, %v1212, 0.0
    %v1278 = vsel %vm1227, %v1213, 0.0
    %v1279 = vsel %vm1227, %v1214, 0.0
    %v1280 = vsel %vm1227, %v1215, 0.0
    %v1281 = vsel %vm1227, %v1216, 0.0
    %v1282 = vsel %vm1227, %v1217, 0.0
    %v1283 = vsel %vm1227, %v1218, 0.0
    %v1284 = vsel %vm1227, %v1219, 0.0
    %v1285 = vsel %vm1227, %v1220, 0.0
    %v1286 = vsel %vm1227, %v1221, 0.0
    %v1287 = vsel %vm1227, %v1222, 0.0
    %v1288 = vsel %vm1227, %v1223, 0.0
    %v1289 = vsel %vm1227, %v1224, 0.0
    %v1290 = vsel %vm1227, %v1225, 0.0
    %v1291 = vsel %vm1227, %v1226, 0.0
    %v1292 = vld [vmem:[#allocation6] sm:$0xff]
    %v1293 = vld [vmem:[#allocation6 + $0x8] sm:$0xff]
    %v1294 = vld [vmem:[#allocation6 + $0x10] sm:$0xff]
    %v1295 = vld [vmem:[#allocation6 + $0x18] sm:$0xff]
    %v1296 = vld [vmem:[#allocation6 + $0x20] sm:$0xff]
    %v1297 = vld [vmem:[#allocation6 + $0x28] sm:$0xff]
    %v1298 = vld [vmem:[#allocation6 + $0x30] sm:$0xff]
    %v1299 = vld [vmem:[#allocation6 + $0x38] sm:$0xff]
    %v1300 = vld [vmem:[#allocation6 + $0x40] sm:$0xff]
    %v1301 = vld [vmem:[#allocation6 + $0x48] sm:$0xff]
    %v1302 = vld [vmem:[#allocation6 + $0x50] sm:$0xff]
    %v1303 = vld [vmem:[#allocation6 + $0x58] sm:$0xff]
    %v1304 = vld [vmem:[#allocation6 + $0x60] sm:$0xff]
    %v1305 = vld [vmem:[#allocation6 + $0x68] sm:$0xff]
    %v1306 = vld [vmem:[#allocation6 + $0x70] sm:$0xff]
    %v1307 = vld [vmem:[#allocation6 + $0x78] sm:$0xff]
    %v1308 = vld [vmem:[%s2] sm:$0x1]
    %v1310 = vlaneseq
    %v1311 = vshrl.u32 %v1310, 7
    %v1312 = vsub.s32 0, %v1311
    %v1313 = vrot.slane %v1308, %v1312
    %1315 = vmatprep.subr.mxu0 0.0
    %1316 = vmatpush1.msra.mxu0 %v1292
    %1317 = vmatprep.subr.mxu0 0.0
    %1318 = vmatpush1.msra.mxu0 %v1293
    %1319 = vmatprep.subr.mxu0 0.0
    %1320 = vmatpush1.msra.mxu0 %v1294
    %1321 = vmatprep.subr.mxu0 0.0
    %1322 = vmatpush1.msra.mxu0 %v1295
    %1323 = vmatprep.subr.mxu0 0.0
    %1324 = vmatpush1.msra.mxu0 %v1296
    %1325 = vmatprep.subr.mxu0 0.0
    %1326 = vmatpush1.msra.mxu0 %v1297
    %1327 = vmatprep.subr.mxu0 0.0
    %1328 = vmatpush1.msra.mxu0 %v1298
    %1329 = vmatprep.subr.mxu0 0.0
    %1330 = vmatpush1.msra.mxu0 %v1299
    %1331 = vmatprep.subr.mxu0 0.0
    %1332 = vmatpush1.msra.mxu0 %v1300
    %1333 = vmatprep.subr.mxu0 0.0
    %1334 = vmatpush1.msra.mxu0 %v1301
    %1335 = vmatprep.subr.mxu0 0.0
    %1336 = vmatpush1.msra.mxu0 %v1302
    %1337 = vmatprep.subr.mxu0 0.0
    %1338 = vmatpush1.msra.mxu0 %v1303
    %1339 = vmatprep.subr.mxu0 0.0
    %1340 = vmatpush1.msra.mxu0 %v1304
    %1341 = vmatprep.subr.mxu0 0.0
    %1342 = vmatpush1.msra.mxu0 %v1305
    %1343 = vmatprep.subr.mxu0 0.0
    %1344 = vmatpush1.msra.mxu0 %v1306
    %1345 = vmatprep.subr.mxu0 0.0
    %1346 = vmatpush1.msra.mxu0 %v1307
    %1347 = vmatprep.subr.mxu0 0.0
    %1348 = vmatpush1.msra.mxu0 0.0
    %1349 = vmatprep.subr.mxu0 0.0
    %1350 = vmatpush1.msra.mxu0 0.0
    %1351 = vmatprep.subr.mxu0 0.0
    %1352 = vmatpush1.msra.mxu0 0.0
    %1353 = vmatprep.subr.mxu0 0.0
    %1354 = vmatpush1.msra.mxu0 0.0
    %1355 = vmatprep.subr.mxu0 0.0
    %1356 = vmatpush1.msra.mxu0 0.0
    %1357 = vmatprep.subr.mxu0 0.0
    %1358 = vmatpush1.msra.mxu0 0.0
    %1359 = vmatprep.subr.mxu0 0.0
    %1360 = vmatpush1.msra.mxu0 0.0
    %1361 = vmatprep.subr.mxu0 0.0
    %1362 = vmatpush1.msra.mxu0 0.0
    %1363 = vmatprep.subr.mxu0 0.0
    %1364 = vmatpush1.msra.mxu0 0.0
    %1365 = vmatprep.subr.mxu0 0.0
    %1366 = vmatpush1.msra.mxu0 0.0
    %1367 = vmatprep.subr.mxu0 0.0
    %1368 = vmatpush1.msra.mxu0 0.0
    %1369 = vmatprep.subr.mxu0 0.0
    %1370 = vmatpush1.msra.mxu0 0.0
    %1371 = vmatprep.subr.mxu0 0.0
    %1372 = vmatpush1.msra.mxu0 0.0
    %1373 = vmatprep.subr.mxu0 0.0
    %1374 = vmatpush1.msra.mxu0 0.0
    %1375 = vmatprep.subr.mxu0 0.0
    %1376 = vmatpush1.msra.mxu0 0.0
    %1377 = vmatprep.subr.mxu0 0.0
    %1378 = vmatpush1.msra.mxu0 0.0
    %1379 = vmatprep.mubr.f32.mxu0 0.0
    %1380 = vmatmul.mubr.f32.gmra.mrb[0].mxu0 %v1228
    %v1381 = vpop.f32.mrb[0].mxu0
    %v1382 = vadd.f32 %v1313, %v1381
    %v1383 = vpop.f32.mrb[0].mxu0
    %1384 = vmatprep.mubr.f32.mxu0 0.0
    %1385 = vmatmul.mubr.f32.gmra.mrb[0].mxu0 %v1229
    %v1386 = vpop.f32.mrb[0].mxu0
    %v1387 = vadd.f32 %v1313, %v1386
    %v1388 = vpop.f32.mrb[0].mxu0
    %1389 = vmatprep.mubr.f32.mxu0 0.0
    %1390 = vmatmul.mubr.f32.gmra.mrb[0].mxu0 %v1230
    %v1391 = vpop.f32.mrb[0].mxu0
    %v1392 = vadd.f32 %v1313, %v1391
    %v1393 = vpop.f32.mrb[0].mxu0
    %1394 = vmatprep.mubr.f32.mxu0 0.0
    %1395 = vmatmul.mubr.f32.gmra.mrb[0].mxu0 %v1231
    %v1396 = vpop.f32.mrb[0].mxu0
    %v1397 = vadd.f32 %v1313, %v1396
    %v1398 = vpop.f32.mrb[0].mxu0
    %1399 = vmatprep.mubr.f32.mxu0 0.0
    %1400 = vmatmul.mubr.f32.gmra.mrb[0].mxu0 %v1232
    %v1401 = vpop.f32.mrb[0].mxu0
    %v1402 = vadd.f32 %v1313, %v1401
    %v1403 = vpop.f32.mrb[0].mxu0
    %1404 = vmatprep.mubr.f32.mxu0 0.0
    %1405 = vmatmul.mubr.f32.gmra.mrb[0].mxu0 %v1233
    %v1406 = vpop.f32.mrb[0].mxu0
    %v1407 = vadd.f32 %v1313, %v1406
    %v1408 = vpop.f32.mrb[0].mxu0
    %1409 = vmatprep.mubr.f32.mxu0 0.0
    %1410 = vmatmul.mubr.f32.gmra.mrb[0].mxu0 %v1234
    %v1411 = vpop.f32.mrb[0].mxu0
    %v1412 = vadd.f32 %v1313, %v1411
    %v1413 = vpop.f32.mrb[0].mxu0
    %1414 = vmatprep.mubr.f32.mxu0 0.0
    %1415 = vmatmul.mubr.f32.gmra.mrb[0].mxu0 %v1235
    %v1416 = vpop.f32.mrb[0].mxu0
    %v1417 = vadd.f32 %v1313, %v1416
    %v1418 = vpop.f32.mrb[0].mxu0
    %1419 = vmatprep.mubr.f32.mxu0 0.0
    %1420 = vmatmul.mubr.f32.gmra.mrb[0].mxu0 %v1236
    %v1421 = vpop.f32.mrb[0].mxu0
    %v1422 = vadd.f32 %v1313, %v1421
    %v1423 = vpop.f32.mrb[0].mxu0
    %1424 = vmatprep.mubr.f32.mxu0 0.0
    %1425 = vmatmul.mubr.f32.gmra.mrb[0].mxu0 %v1237
    %v1426 = vpop.f32.mrb[0].mxu0
    %v1427 = vadd.f32 %v1313, %v1426
    %v1428 = vpop.f32.mrb[0].mxu0
    %1429 = vmatprep.mubr.f32.mxu0 0.0
    %1430 = vmatmul.mubr.f32.gmra.mrb[0].mxu0 %v1238
    %v1431 = vpop.f32.mrb[0].mxu0
    %v1432 = vadd.f32 %v1313, %v1431
    %v1433 = vpop.f32.mrb[0].mxu0
    %1434 = vmatprep.mubr.f32.mxu0 0.0
    %1435 = vmatmul.mubr.f32.gmra.mrb[0].mxu0 %v1239
    %v1436 = vpop.f32.mrb[0].mxu0
    %v1437 = vadd.f32 %v1313, %v1436
    %v1438 = vpop.f32.mrb[0].mxu0
    %1439 = vmatprep.mubr.f32.mxu0 0.0
    %1440 = vmatmul.mubr.f32.gmra.mrb[0].mxu0 %v1240
    %v1441 = vpop.f32.mrb[0].mxu0
    %v1442 = vadd.f32 %v1313, %v1441
    %v1443 = vpop.f32.mrb[0].mxu0
    %1444 = vmatprep.mubr.f32.mxu0 0.0
    %1445 = vmatmul.mubr.f32.gmra.mrb[0].mxu0 %v1241
    %v1446 = vpop.f32.mrb[0].mxu0
    %v1447 = vadd.f32 %v1313, %v1446
    %v1448 = vpop.f32.mrb[0].mxu0
    %1449 = vmatprep.mubr.f32.mxu0 0.0
    %1450 = vmatmul.mubr.f32.gmra.mrb[0].mxu0 %v1242
    %v1451 = vpop.f32.mrb[0].mxu0
    %v1452 = vadd.f32 %v1313, %v1451
    %v1453 = vpop.f32.mrb[0].mxu0
    %1454 = vmatprep.mubr.f32.mxu0 0.0
    %1455 = vmatmul.mubr.f32.gmra.mrb[0].mxu0 %v1243
    %v1456 = vpop.f32.mrb[0].mxu0
    %v1457 = vadd.f32 %v1313, %v1456
    %v1458 = vpop.f32.mrb[0].mxu0
    %1459 = vmatprep.mubr.f32.mxu0 0.0
    %1460 = vmatmul.mubr.f32.gmra.mrb[0].mxu0 %v1244
    %v1461 = vpop.f32.mrb[0].mxu0
    %v1462 = vadd.f32 %v1313, %v1461
    %v1463 = vpop.f32.mrb[0].mxu0
    %1464 = vmatprep.mubr.f32.mxu0 0.0
    %1465 = vmatmul.mubr.f32.gmra.mrb[0].mxu0 %v1245
    %v1466 = vpop.f32.mrb[0].mxu0
    %v1467 = vadd.f32 %v1313, %v1466
    %v1468 = vpop.f32.mrb[0].mxu0
    %1469 = vmatprep.mubr.f32.mxu0 0.0
    %1470 = vmatmul.mubr.f32.gmra.mrb[0].mxu0 %v1246
    %v1471 = vpop.f32.mrb[0].mxu0
    %v1472 = vadd.f32 %v1313, %v1471
    %v1473 = vpop.f32.mrb[0].mxu0
    %1474 = vmatprep.mubr.f32.mxu0 0.0
    %1475 = vmatmul.mubr.f32.gmra.mrb[0].mxu0 %v1247
    %v1476 = vpop.f32.mrb[0].mxu0
    %v1477 = vadd.f32 %v1313, %v1476
    %v1478 = vpop.f32.mrb[0].mxu0
    %1479 = vmatprep.mubr.f32.mxu0 0.0
    %1480 = vmatmul.mubr.f32.gmra.mrb[0].mxu0 %v1248
    %v1481 = vpop.f32.mrb[0].mxu0
    %v1482 = vadd.f32 %v1313, %v1481
    %v1483 = vpop.f32.mrb[0].mxu0
    %1484 = vmatprep.mubr.f32.mxu0 0.0
    %1485 = vmatmul.mubr.f32.gmra.mrb[0].mxu0 %v1249
    %v1486 = vpop.f32.mrb[0].mxu0
    %v1487 = vadd.f32 %v1313, %v1486
    %v1488 = vpop.f32.mrb[0].mxu0
    %1489 = vmatprep.mubr.f32.mxu0 0.0
    %1490 = vmatmul.mubr.f32.gmra.mrb[0].mxu0 %v1250
    %v1491 = vpop.f32.mrb[0].mxu0
    %v1492 = vadd.f32 %v1313, %v1491
    %v1493 = vpop.f32.mrb[0].mxu0
    %1494 = vmatprep.mubr.f32.mxu0 0.0
    %1495 = vmatmul.mubr.f32.gmra.mrb[0].mxu0 %v1251
    %v1496 = vpop.f32.mrb[0].mxu0
    %v1497 = vadd.f32 %v1313, %v1496
    %v1498 = vpop.f32.mrb[0].mxu0
    %1499 = vmatprep.mubr.f32.mxu0 0.0
    %1500 = vmatmul.mubr.f32.gmra.mrb[0].mxu0 %v1252
    %v1501 = vpop.f32.mrb[0].mxu0
    %v1502 = vadd.f32 %v1313, %v1501
    %v1503 = vpop.f32.mrb[0].mxu0
    %1504 = vmatprep.mubr.f32.mxu0 0.0
    %1505 = vmatmul.mubr.f32.gmra.mrb[0].mxu0 %v1253
    %v1506 = vpop.f32.mrb[0].mxu0
    %v1507 = vadd.f32 %v1313, %v1506
    %v1508 = vpop.f32.mrb[0].mxu0
    %1509 = vmatprep.mubr.f32.mxu0 0.0
    %1510 = vmatmul.mubr.f32.gmra.mrb[0].mxu0 %v1254
    %v1511 = vpop.f32.mrb[0].mxu0
    %v1512 = vadd.f32 %v1313, %v1511
    %v1513 = vpop.f32.mrb[0].mxu0
    %1514 = vmatprep.mubr.f32.mxu0 0.0
    %1515 = vmatmul.mubr.f32.gmra.mrb[0].mxu0 %v1255
    %v1516 = vpop.f32.mrb[0].mxu0
    %v1517 = vadd.f32 %v1313, %v1516
    %v1518 = vpop.f32.mrb[0].mxu0
    %1519 = vmatprep.mubr.f32.mxu0 0.0
    %1520 = vmatmul.mubr.f32.gmra.mrb[0].mxu0 %v1256
    %v1521 = vpop.f32.mrb[0].mxu0
    %v1522 = vadd.f32 %v1313, %v1521
    %v1523 = vpop.f32.mrb[0].mxu0
    %1524 = vmatprep.mubr.f32.mxu0 0.0
    %1525 = vmatmul.mubr.f32.gmra.mrb[0].mxu0 %v1257
    %v1526 = vpop.f32.mrb[0].mxu0
    %v1527 = vadd.f32 %v1313, %v1526
    %v1528 = vpop.f32.mrb[0].mxu0
    %1529 = vmatprep.mubr.f32.mxu0 0.0
    %1530 = vmatmul.mubr.f32.gmra.mrb[0].mxu0 %v1258
    %v1531 = vpop.f32.mrb[0].mxu0
    %v1532 = vadd.f32 %v1313, %v1531
    %v1533 = vpop.f32.mrb[0].mxu0
    %1534 = vmatprep.mubr.f32.mxu0 0.0
    %1535 = vmatmul.mubr.f32.gmra.mrb[0].mxu0 %v1259
    %v1536 = vpop.f32.mrb[0].mxu0
    %v1537 = vadd.f32 %v1313, %v1536
    %v1538 = vpop.f32.mrb[0].mxu0
    %1539 = vmatprep.mubr.f32.mxu0 0.0
    %1540 = vmatmul.mubr.f32.gmra.mrb[0].mxu0 %v1260
    %v1541 = vpop.f32.mrb[0].mxu0
    %v1542 = vadd.f32 %v1313, %v1541
    %v1543 = vpop.f32.mrb[0].mxu0
    %1544 = vmatprep.mubr.f32.mxu0 0.0
    %1545 = vmatmul.mubr.f32.gmra.mrb[0].mxu0 %v1261
    %v1546 = vpop.f32.mrb[0].mxu0
    %v1547 = vadd.f32 %v1313, %v1546
    %v1548 = vpop.f32.mrb[0].mxu0
    %1549 = vmatprep.mubr.f32.mxu0 0.0
    %1550 = vmatmul.mubr.f32.gmra.mrb[0].mxu0 %v1262
    %v1551 = vpop.f32.mrb[0].mxu0
    %v1552 = vadd.f32 %v1313, %v1551
    %v1553 = vpop.f32.mrb[0].mxu0
    %1554 = vmatprep.mubr.f32.mxu0 0.0
    %1555 = vmatmul.mubr.f32.gmra.mrb[0].mxu0 %v1263
    %v1556 = vpop.f32.mrb[0].mxu0
    %v1557 = vadd.f32 %v1313, %v1556
    %v1558 = vpop.f32.mrb[0].mxu0
    %1559 = vmatprep.mubr.f32.mxu0 0.0
    %1560 = vmatmul.mubr.f32.gmra.mrb[0].mxu0 %v1264
    %v1561 = vpop.f32.mrb[0].mxu0
    %v1562 = vadd.f32 %v1313, %v1561
    %v1563 = vpop.f32.mrb[0].mxu0
    %1564 = vmatprep.mubr.f32.mxu0 0.0
    %1565 = vmatmul.mubr.f32.gmra.mrb[0].mxu0 %v1265
    %v1566 = vpop.f32.mrb[0].mxu0
    %v1567 = vadd.f32 %v1313, %v1566
    %v1568 = vpop.f32.mrb[0].mxu0
    %1569 = vmatprep.mubr.f32.mxu0 0.0
    %1570 = vmatmul.mubr.f32.gmra.mrb[0].mxu0 %v1266
    %v1571 = vpop.f32.mrb[0].mxu0
    %v1572 = vadd.f32 %v1313, %v1571
    %v1573 = vpop.f32.mrb[0].mxu0
    %1574 = vmatprep.mubr.f32.mxu0 0.0
    %1575 = vmatmul.mubr.f32.gmra.mrb[0].mxu0 %v1267
    %v1576 = vpop.f32.mrb[0].mxu0
    %v1577 = vadd.f32 %v1313, %v1576
    %v1578 = vpop.f32.mrb[0].mxu0
    %1579 = vmatprep.mubr.f32.mxu0 0.0
    %1580 = vmatmul.mubr.f32.gmra.mrb[0].mxu0 %v1268
    %v1581 = vpop.f32.mrb[0].mxu0
    %v1582 = vadd.f32 %v1313, %v1581
    %v1583 = vpop.f32.mrb[0].mxu0
    %1584 = vmatprep.mubr.f32.mxu0 0.0
    %1585 = vmatmul.mubr.f32.gmra.mrb[0].mxu0 %v1269
    %v1586 = vpop.f32.mrb[0].mxu0
    %v1587 = vadd.f32 %v1313, %v1586
    %v1588 = vpop.f32.mrb[0].mxu0
    %1589 = vmatprep.mubr.f32.mxu0 0.0
    %1590 = vmatmul.mubr.f32.gmra.mrb[0].mxu0 %v1270
    %v1591 = vpop.f32.mrb[0].mxu0
    %v1592 = vadd.f32 %v1313, %v1591
    %v1593 = vpop.f32.mrb[0].mxu0
    %1594 = vmatprep.mubr.f32.mxu0 0.0
    %1595 = vmatmul.mubr.f32.gmra.mrb[0].mxu0 %v1271
    %v1596 = vpop.f32.mrb[0].mxu0
    %v1597 = vadd.f32 %v1313, %v1596
    %v1598 = vpop.f32.mrb[0].mxu0
    %1599 = vmatprep.mubr.f32.mxu0 0.0
    %1600 = vmatmul.mubr.f32.gmra.mrb[0].mxu0 %v1272
    %v1601 = vpop.f32.mrb[0].mxu0
    %v1602 = vadd.f32 %v1313, %v1601
    %v1603 = vpop.f32.mrb[0].mxu0
    %1604 = vmatprep.mubr.f32.mxu0 0.0
    %1605 = vmatmul.mubr.f32.gmra.mrb[0].mxu0 %v1273
    %v1606 = vpop.f32.mrb[0].mxu0
    %v1607 = vadd.f32 %v1313, %v1606
    %v1608 = vpop.f32.mrb[0].mxu0
    %1609 = vmatprep.mubr.f32.mxu0 0.0
    %1610 = vmatmul.mubr.f32.gmra.mrb[0].mxu0 %v1274
    %v1611 = vpop.f32.mrb[0].mxu0
    %v1612 = vadd.f32 %v1313, %v1611
    %v1613 = vpop.f32.mrb[0].mxu0
    %1614 = vmatprep.mubr.f32.mxu0 0.0
    %1615 = vmatmul.mubr.f32.gmra.mrb[0].mxu0 %v1275
    %v1616 = vpop.f32.mrb[0].mxu0
    %v1617 = vadd.f32 %v1313, %v1616
    %v1618 = vpop.f32.mrb[0].mxu0
    %1619 = vmatprep.mubr.f32.mxu0 0.0
    %1620 = vmatmul.mubr.f32.gmra.mrb[0].mxu0 %v1276
    %v1621 = vpop.f32.mrb[0].mxu0
    %v1622 = vadd.f32 %v1313, %v1621
    %v1623 = vpop.f32.mrb[0].mxu0
    %1624 = vmatprep.mubr.f32.mxu0 0.0
    %1625 = vmatmul.mubr.f32.gmra.mrb[0].mxu0 %v1277
    %v1626 = vpop.f32.mrb[0].mxu0
    %v1627 = vadd.f32 %v1313, %v1626
    %v1628 = vpop.f32.mrb[0].mxu0
    %1629 = vmatprep.mubr.f32.mxu0 0.0
    %1630 = vmatmul.mubr.f32.gmra.mrb[0].mxu0 %v1278
    %v1631 = vpop.f32.mrb[0].mxu0
    %v1632 = vadd.f32 %v1313, %v1631
    %v1633 = vpop.f32.mrb[0].mxu0
    %1634 = vmatprep.mubr.f32.mxu0 0.0
    %1635 = vmatmul.mubr.f32.gmra.mrb[0].mxu0 %v1279
    %v1636 = vpop.f32.mrb[0].mxu0
    %v1637 = vadd.f32 %v1313, %v1636
    %v1638 = vpop.f32.mrb[0].mxu0
    %1639 = vmatprep.mubr.f32.mxu0 0.0
    %1640 = vmatmul.mubr.f32.gmra.mrb[0].mxu0 %v1280
    %v1641 = vpop.f32.mrb[0].mxu0
    %v1642 = vadd.f32 %v1313, %v1641
    %v1643 = vpop.f32.mrb[0].mxu0
    %1644 = vmatprep.mubr.f32.mxu0 0.0
    %1645 = vmatmul.mubr.f32.gmra.mrb[0].mxu0 %v1281
    %v1646 = vpop.f32.mrb[0].mxu0
    %v1647 = vadd.f32 %v1313, %v1646
    %v1648 = vpop.f32.mrb[0].mxu0
    %1649 = vmatprep.mubr.f32.mxu0 0.0
    %1650 = vmatmul.mubr.f32.gmra.mrb[0].mxu0 %v1282
    %v1651 = vpop.f32.mrb[0].mxu0
    %v1652 = vadd.f32 %v1313, %v1651
    %v1653 = vpop.f32.mrb[0].mxu0
    %1654 = vmatprep.mubr.f32.mxu0 0.0
    %1655 = vmatmul.mubr.f32.gmra.mrb[0].mxu0 %v1283
    %v1656 = vpop.f32.mrb[0].mxu0
    %v1657 = vadd.f32 %v1313, %v1656
    %v1658 = vpop.f32.mrb[0].mxu0
    %1659 = vmatprep.mubr.f32.mxu0 0.0
    %1660 = vmatmul.mubr.f32.gmra.mrb[0].mxu0 %v1284
    %v1661 = vpop.f32.mrb[0].mxu0
    %v1662 = vadd.f32 %v1313, %v1661
    %v1663 = vpop.f32.mrb[0].mxu0
    %1664 = vmatprep.mubr.f32.mxu0 0.0
    %1665 = vmatmul.mubr.f32.gmra.mrb[0].mxu0 %v1285
    %v1666 = vpop.f32.mrb[0].mxu0
    %v1667 = vadd.f32 %v1313, %v1666
    %v1668 = vpop.f32.mrb[0].mxu0
    %1669 = vmatprep.mubr.f32.mxu0 0.0
    %1670 = vmatmul.mubr.f32.gmra.mrb[0].mxu0 %v1286
    %v1671 = vpop.f32.mrb[0].mxu0
    %v1672 = vadd.f32 %v1313, %v1671
    %v1673 = vpop.f32.mrb[0].mxu0
    %1674 = vmatprep.mubr.f32.mxu0 0.0
    %1675 = vmatmul.mubr.f32.gmra.mrb[0].mxu0 %v1287
    %v1676 = vpop.f32.mrb[0].mxu0
    %v1677 = vadd.f32 %v1313, %v1676
    %v1678 = vpop.f32.mrb[0].mxu0
    %1679 = vmatprep.mubr.f32.mxu0 0.0
    %1680 = vmatmul.mubr.f32.gmra.mrb[0].mxu0 %v1288
    %v1681 = vpop.f32.mrb[0].mxu0
    %v1682 = vadd.f32 %v1313, %v1681
    %v1683 = vpop.f32.mrb[0].mxu0
    %1684 = vmatprep.mubr.f32.mxu0 0.0
    %1685 = vmatmul.mubr.f32.gmra.mrb[0].mxu0 %v1289
    %v1686 = vpop.f32.mrb[0].mxu0
    %v1687 = vadd.f32 %v1313, %v1686
    %v1688 = vpop.f32.mrb[0].mxu0
    %1689 = vmatprep.mubr.f32.mxu0 0.0
    %1690 = vmatmul.mubr.f32.gmra.mrb[0].mxu0 %v1290
    %v1691 = vpop.f32.mrb[0].mxu0
    %v1692 = vadd.f32 %v1313, %v1691
    %v1693 = vpop.f32.mrb[0].mxu0
    %1694 = vmatprep.mubr.f32.mxu0 0.0
    %1695 = vmatmul.mubr.f32.gmra.mrb[0].mxu0 %v1291
    %v1696 = vpop.f32.mrb[0].mxu0
    %v1697 = vadd.f32 %v1313, %v1696
    %v1698 = vpop.f32.mrb[0].mxu0
    %1699 = vdwg.mxu0
    %v1700 = vmax.f32 %v1382, 0.0
    %v1701 = vmax.f32 %v1387, 0.0
    %v1702 = vmax.f32 %v1392, 0.0
    %v1703 = vmax.f32 %v1397, 0.0
    %v1704 = vmax.f32 %v1402, 0.0
    %v1705 = vmax.f32 %v1407, 0.0
    %v1706 = vmax.f32 %v1412, 0.0
    %v1707 = vmax.f32 %v1417, 0.0
    %v1708 = vmax.f32 %v1422, 0.0
    %v1709 = vmax.f32 %v1427, 0.0
    %v1710 = vmax.f32 %v1432, 0.0
    %v1711 = vmax.f32 %v1437, 0.0
    %v1712 = vmax.f32 %v1442, 0.0
    %v1713 = vmax.f32 %v1447, 0.0
    %v1714 = vmax.f32 %v1452, 0.0
    %v1715 = vmax.f32 %v1457, 0.0
    %v1716 = vmax.f32 %v1462, 0.0
    %v1717 = vmax.f32 %v1467, 0.0
    %v1718 = vmax.f32 %v1472, 0.0
    %v1719 = vmax.f32 %v1477, 0.0
    %v1720 = vmax.f32 %v1482, 0.0
    %v1721 = vmax.f32 %v1487, 0.0
    %v1722 = vmax.f32 %v1492, 0.0
    %v1723 = vmax.f32 %v1497, 0.0
    %v1724 = vmax.f32 %v1502, 0.0
    %v1725 = vmax.f32 %v1507, 0.0
    %v1726 = vmax.f32 %v1512, 0.0
    %v1727 = vmax.f32 %v1517, 0.0
    %v1728 = vmax.f32 %v1522, 0.0
    %v1729 = vmax.f32 %v1527, 0.0
    %v1730 = vmax.f32 %v1532, 0.0
    %v1731 = vmax.f32 %v1537, 0.0
    %v1732 = vmax.f32 %v1542, 0.0
    %v1733 = vmax.f32 %v1547, 0.0
    %v1734 = vmax.f32 %v1552, 0.0
    %v1735 = vmax.f32 %v1557, 0.0
    %v1736 = vmax.f32 %v1562, 0.0
    %v1737 = vmax.f32 %v1567, 0.0
    %v1738 = vmax.f32 %v1572, 0.0
    %v1739 = vmax.f32 %v1577, 0.0
    %v1740 = vmax.f32 %v1582, 0.0
    %v1741 = vmax.f32 %v1587, 0.0
    %v1742 = vmax.f32 %v1592, 0.0
    %v1743 = vmax.f32 %v1597, 0.0
    %v1744 = vmax.f32 %v1602, 0.0
    %v1745 = vmax.f32 %v1607, 0.0
    %v1746 = vmax.f32 %v1612, 0.0
    %v1747 = vmax.f32 %v1617, 0.0
    %v1748 = vmax.f32 %v1622, 0.0
    %v1749 = vmax.f32 %v1627, 0.0
    %v1750 = vmax.f32 %v1632, 0.0
    %v1751 = vmax.f32 %v1637, 0.0
    %v1752 = vmax.f32 %v1642, 0.0
    %v1753 = vmax.f32 %v1647, 0.0
    %v1754 = vmax.f32 %v1652, 0.0
    %v1755 = vmax.f32 %v1657, 0.0
    %v1756 = vmax.f32 %v1662, 0.0
    %v1757 = vmax.f32 %v1667, 0.0
    %v1758 = vmax.f32 %v1672, 0.0
    %v1759 = vmax.f32 %v1677, 0.0
    %v1760 = vmax.f32 %v1682, 0.0
    %v1761 = vmax.f32 %v1687, 0.0
    %v1762 = vmax.f32 %v1692, 0.0
    %v1763 = vmax.f32 %v1697, 0.0
    %v1764 = vadd.f32 %v1700, %v1702
    %v1765 = vadd.f32 %v1701, %v1703
    %v1766 = vadd.f32 %v1704, %v1706
    %v1767 = vadd.f32 %v1705, %v1707
    %v1768 = vadd.f32 %v1708, %v1710
    %v1769 = vadd.f32 %v1709, %v1711
    %v1770 = vadd.f32 %v1712, %v1714
    %v1771 = vadd.f32 %v1713, %v1715
    %v1772 = vadd.f32 %v1716, %v1718
    %v1773 = vadd.f32 %v1717, %v1719
    %v1774 = vadd.f32 %v1720, %v1722
    %v1775 = vadd.f32 %v1721, %v1723
    %v1776 = vadd.f32 %v1724, %v1726
    %v1777 = vadd.f32 %v1725, %v1727
    %v1778 = vadd.f32 %v1728, %v1730
    %v1779 = vadd.f32 %v1729, %v1731
    %v1780 = vadd.f32 %v1732, %v1734
    %v1781 = vadd.f32 %v1733, %v1735
    %v1782 = vadd.f32 %v1736, %v1738
    %v1783 = vadd.f32 %v1737, %v1739
    %v1784 = vadd.f32 %v1740, %v1742
    %v1785 = vadd.f32 %v1741, %v1743
    %v1786 = vadd.f32 %v1744, %v1746
    %v1787 = vadd.f32 %v1745, %v1747
    %v1788 = vadd.f32 %v1748, %v1750
    %v1789 = vadd.f32 %v1749, %v1751
    %v1790 = vadd.f32 %v1752, %v1754
    %v1791 = vadd.f32 %v1753, %v1755
    %v1792 = vadd.f32 %v1756, %v1758
    %v1793 = vadd.f32 %v1757, %v1759
    %v1794 = vadd.f32 %v1760, %v1762
    %v1795 = vadd.f32 %v1761, %v1763
    %1796 = vst [vmem:[#allocation2] sm:$0xff] %v1764
    %1797 = vst [vmem:[#allocation2 + $0x8] sm:$0xff] %v1765
    %1798 = vst [vmem:[#allocation2 + $0x10] sm:$0xff] %v1766
    %1799 = vst [vmem:[#allocation2 + $0x18] sm:$0xff] %v1767
    %1800 = vst [vmem:[#allocation2 + $0x20] sm:$0xff] %v1768
    %1801 = vst [vmem:[#allocation2 + $0x28] sm:$0xff] %v1769
    %1802 = vst [vmem:[#allocation2 + $0x30] sm:$0xff] %v1770
    %1803 = vst [vmem:[#allocation2 + $0x38] sm:$0xff] %v1771
    %1804 = vst [vmem:[#allocation2 + $0x40] sm:$0xff] %v1772
    %1805 = vst [vmem:[#allocation2 + $0x48] sm:$0xff] %v1773
    %1806 = vst [vmem:[#allocation2 + $0x50] sm:$0xff] %v1774
    %1807 = vst [vmem:[#allocation2 + $0x58] sm:$0xff] %v1775
    %1808 = vst [vmem:[#allocation2 + $0x60] sm:$0xff] %v1776
    %1809 = vst [vmem:[#allocation2 + $0x68] sm:$0xff] %v1777
    %1810 = vst [vmem:[#allocation2 + $0x70] sm:$0xff] %v1778
    %1811 = vst [vmem:[#allocation2 + $0x78] sm:$0xff] %v1779
    %1812 = vst [vmem:[#allocation2 + $0x80] sm:$0xff] %v1780
    %1813 = vst [vmem:[#allocation2 + $0x88] sm:$0xff] %v1781
    %1814 = vst [vmem:[#allocation2 + $0x90] sm:$0xff] %v1782
    %1815 = vst [vmem:[#allocation2 + $0x98] sm:$0xff] %v1783
    %1816 = vst [vmem:[#allocation2 + $0xa0] sm:$0xff] %v1784
    %1817 = vst [vmem:[#allocation2 + $0xa8] sm:$0xff] %v1785
    %1818 = vst [vmem:[#allocation2 + $0xb0] sm:$0xff] %v1786
    %1819 = vst [vmem:[#allocation2 + $0xb8] sm:$0xff] %v1787
    %1820 = vst [vmem:[#allocation2 + $0xc0] sm:$0xff] %v1788
    %1821 = vst [vmem:[#allocation2 + $0xc8] sm:$0xff] %v1789
    %1822 = vst [vmem:[#allocation2 + $0xd0] sm:$0xff] %v1790
    %1823 = vst [vmem:[#allocation2 + $0xd8] sm:$0xff] %v1791
    %1824 = vst [vmem:[#allocation2 + $0xe0] sm:$0xff] %v1792
    %1825 = vst [vmem:[#allocation2 + $0xe8] sm:$0xff] %v1793
    %1826 = vst [vmem:[#allocation2 + $0xf0] sm:$0xff] %v1794
    %1827 = vst [vmem:[#allocation2 + $0xf8] sm:$0xff] %v1795
    %v1828 = vld [vmem:[#allocation2] ss:$2 sm:$0xff]
    %s1829 = scalar_lea.vmem [#allocation2], 16
    %v1830 = vld [vmem:[%s1829] ss:$2 sm:$0xff]
    %s1831 = scalar_lea.vmem [#allocation2], 32
    %v1832 = vld [vmem:[%s1831] ss:$2 sm:$0xff]
    %s1833 = scalar_lea.vmem [#allocation2], 48
    %v1834 = vld [vmem:[%s1833] ss:$2 sm:$0xff]
    %s1835 = scalar_lea.vmem [#allocation2], 64
    %v1836 = vld [vmem:[%s1835] ss:$2 sm:$0xff]
    %s1837 = scalar_lea.vmem [#allocation2], 80
    %v1838 = vld [vmem:[%s1837] ss:$2 sm:$0xff]
    %s1839 = scalar_lea.vmem [#allocation2], 96
    %v1840 = vld [vmem:[%s1839] ss:$2 sm:$0xff]
    %s1841 = scalar_lea.vmem [#allocation2], 112
    %v1842 = vld [vmem:[%s1841] ss:$2 sm:$0xff]
    %s1843 = scalar_lea.vmem [#allocation2], 128
    %v1844 = vld [vmem:[%s1843] ss:$2 sm:$0xff]
    %s1845 = scalar_lea.vmem [#allocation2], 144
    %v1846 = vld [vmem:[%s1845] ss:$2 sm:$0xff]
    %s1847 = scalar_lea.vmem [#allocation2], 160
    %v1848 = vld [vmem:[%s1847] ss:$2 sm:$0xff]
    %s1849 = scalar_lea.vmem [#allocation2], 176
    %v1850 = vld [vmem:[%s1849] ss:$2 sm:$0xff]
    %s1851 = scalar_lea.vmem [#allocation2], 192
    %v1852 = vld [vmem:[%s1851] ss:$2 sm:$0xff]
    %s1853 = scalar_lea.vmem [#allocation2], 208
    %v1854 = vld [vmem:[%s1853] ss:$2 sm:$0xff]
    %s1855 = scalar_lea.vmem [#allocation2], 224
    %v1856 = vld [vmem:[%s1855] ss:$2 sm:$0xff]
    %s1857 = scalar_lea.vmem [#allocation2], 240
    %v1858 = vld [vmem:[%s1857] ss:$2 sm:$0xff]
    %s1859 = scalar_lea.vmem [#allocation2], 1
    %v1860 = vld [vmem:[%s1859] ss:$2 sm:$0xff]
    %s1861 = scalar_lea.vmem [#allocation2], 17
    %v1862 = vld [vmem:[%s1861] ss:$2 sm:$0xff]
    %s1863 = scalar_lea.vmem [#allocation2], 33
    %v1864 = vld [vmem:[%s1863] ss:$2 sm:$0xff]
    %s1865 = scalar_lea.vmem [#allocation2], 49
    %v1866 = vld [vmem:[%s1865] ss:$2 sm:$0xff]
    %s1867 = scalar_lea.vmem [#allocation2], 65
    %v1868 = vld [vmem:[%s1867] ss:$2 sm:$0xff]
    %s1869 = scalar_lea.vmem [#allocation2], 81
    %v1870 = vld [vmem:[%s1869] ss:$2 sm:$0xff]
    %s1871 = scalar_lea.vmem [#allocation2], 97
    %v1872 = vld [vmem:[%s1871] ss:$2 sm:$0xff]
    %s1873 = scalar_lea.vmem [#allocation2], 113
    %v1874 = vld [vmem:[%s1873] ss:$2 sm:$0xff]
    %s1875 = scalar_lea.vmem [#allocation2], 129
    %v1876 = vld [vmem:[%s1875] ss:$2 sm:$0xff]
    %s1877 = scalar_lea.vmem [#allocation2], 145
    %v1878 = vld [vmem:[%s1877] ss:$2 sm:$0xff]
    %s1879 = scalar_lea.vmem [#allocation2], 161
    %v1880 = vld [vmem:[%s1879] ss:$2 sm:$0xff]
    %s1881 = scalar_lea.vmem [#allocation2], 177
    %v1882 = vld [vmem:[%s1881] ss:$2 sm:$0xff]
    %s1883 = scalar_lea.vmem [#allocation2], 193
    %v1884 = vld [vmem:[%s1883] ss:$2 sm:$0xff]
    %s1885 = scalar_lea.vmem [#allocation2], 209
    %v1886 = vld [vmem:[%s1885] ss:$2 sm:$0xff]
    %s1887 = scalar_lea.vmem [#allocation2], 225
    %v1888 = vld [vmem:[%s1887] ss:$2 sm:$0xff]
    %s1889 = scalar_lea.vmem [#allocation2], 241
    %v1890 = vld [vmem:[%s1889] ss:$2 sm:$0xff]
    %v1891 = vadd.f32 %v1828, %v1860
    %v1892 = vadd.f32 %v1830, %v1862
    %v1893 = vadd.f32 %v1832, %v1864
    %v1894 = vadd.f32 %v1834, %v1866
    %v1895 = vadd.f32 %v1836, %v1868
    %v1896 = vadd.f32 %v1838, %v1870
    %v1897 = vadd.f32 %v1840, %v1872
    %v1898 = vadd.f32 %v1842, %v1874
    %v1899 = vadd.f32 %v1844, %v1876
    %v1900 = vadd.f32 %v1846, %v1878
    %v1901 = vadd.f32 %v1848, %v1880
    %v1902 = vadd.f32 %v1850, %v1882
    %v1903 = vadd.f32 %v1852, %v1884
    %v1904 = vadd.f32 %v1854, %v1886
    %v1905 = vadd.f32 %v1856, %v1888
    %v1906 = vadd.f32 %v1858, %v1890
    %v1907 = vmul.f32 %v1891, 0.25
    %v1908 = vmul.f32 %v1892, 0.25
    %v1909 = vmul.f32 %v1893, 0.25
    %v1910 = vmul.f32 %v1894, 0.25
    %v1911 = vmul.f32 %v1895, 0.25
    %v1912 = vmul.f32 %v1896, 0.25
    %v1913 = vmul.f32 %v1897, 0.25
    %v1914 = vmul.f32 %v1898, 0.25
    %v1915 = vmul.f32 %v1899, 0.25
    %v1916 = vmul.f32 %v1900, 0.25
    %v1917 = vmul.f32 %v1901, 0.25
    %v1918 = vmul.f32 %v1902, 0.25
    %v1919 = vmul.f32 %v1903, 0.25
    %v1920 = vmul.f32 %v1904, 0.25
    %v1921 = vmul.f32 %v1905, 0.25
    %v1922 = vmul.f32 %v1906, 0.25
    %1923 = vst [vmem:[#allocation8] sm:$0xff] %v1907
    %1924 = vst [vmem:[#allocation8 + $0x8] sm:$0xff] %v1908
    %1925 = vst [vmem:[#allocation8 + $0x10] sm:$0xff] %v1909
    %1926 = vst [vmem:[#allocation8 + $0x18] sm:$0xff] %v1910
    %1927 = vst [vmem:[#allocation8 + $0x20] sm:$0xff] %v1911
    %1928 = vst [vmem:[#allocation8 + $0x28] sm:$0xff] %v1912
    %1929 = vst [vmem:[#allocation8 + $0x30] sm:$0xff] %v1913
    %1930 = vst [vmem:[#allocation8 + $0x38] sm:$0xff] %v1914
    %1931 = vst [vmem:[#allocation8 + $0x40] sm:$0xff] %v1915
    %1932 = vst [vmem:[#allocation8 + $0x48] sm:$0xff] %v1916
    %1933 = vst [vmem:[#allocation8 + $0x50] sm:$0xff] %v1917
    %1934 = vst [vmem:[#allocation8 + $0x58] sm:$0xff] %v1918
    %1935 = vst [vmem:[#allocation8 + $0x60] sm:$0xff] %v1919
    %1936 = vst [vmem:[#allocation8 + $0x68] sm:$0xff] %v1920
    %1937 = vst [vmem:[#allocation8 + $0x70] sm:$0xff] %v1921
    %1938 = vst [vmem:[#allocation8 + $0x78] sm:$0xff] %v1922
    // Predicated region
    $region22: #{tpu_custom_call.1} parent=1 // pred_check
      _
    $region23: #{tpu_custom_call.1} parent=1 // pred_check_branch
      %1940 = sbr.rel (0) target = $region25
    $region24: #{tpu_custom_call.1} parent=1 // pred_region
      %s1942 = ssub.s32 2048, 2048
      %1943 = vsyncadd [#allocation5], %s1942
      %s1944 = sshll.u32 [#allocation8], 4
      %s1945 = int_to_ptr.vmem [resolvable:$true] %s1944
      %1950 = dma.vmem_to_hbm [thread:$0]  %s1945, 2048, %s3, [#allocation5], 128, 128, 8
    $region25: #{tpu_custom_call.1} parent=1 // pred_fallthru
      _
    // Predicated region
    $region26: #{tpu_custom_call.1} parent=1 // pred_check
      _
    $region27: #{tpu_custom_call.1} parent=1 // pred_check_branch
      %1952 = sbr.rel (0) target = $region29
    $region28: #{tpu_custom_call.1} parent=1 // pred_region
      %1953 = dma.done [#allocation5], 2048
    $region29: #{tpu_custom_call.1} parent=1 // pred_fallthru
      _
    %1954 = vsyncpa [#allocation4], 1
    %1955 = vsyncpa [#allocation7], 1
    %1956 = vsyncpa [#allocation5], 1

</llo_original>
